<compile_context>
chip_gen: v6e
topology: v6e:2x2x1
jax: 0.10.0
libtpu: 0.0.40
codegen_flags: <defaults>
</compile_context>

<pallas_src>
import functools

import jax
import jax.numpy as jnp
from jax.experimental import pallas as pl
from jax.experimental.pallas import tpu as pltpu


def _round_up(x, m):
    return ((x + m - 1) // m) * m


# ----------------------------------------------------------------------------
# Fused kernel: one batch image per grid step, everything resident in VMEM.
# ----------------------------------------------------------------------------
def _fused_kernel(*refs, H, W, Ho, Wo, stride, has_expand, shortcut):
    if has_expand:
        (x_ref, we_ref, se_ref, be_ref,
         wd_ref, sd_ref, bd_ref,
         wp_ref, sp_ref, bp_ref,
         o_ref, pad_ref) = refs
    else:
        (x_ref,
         wd_ref, sd_ref, bd_ref,
         wp_ref, sp_ref, bp_ref,
         o_ref, pad_ref) = refs

    Cp = x_ref.shape[-1]      # padded input channels  (multiple of 128)
    Hd = pad_ref.shape[-1]    # padded hidden channels (multiple of 128)
    Cop = o_ref.shape[-1]     # padded output channels (multiple of 128)

    x = x_ref[0].astype(jnp.float32)                        # (H, W, Cp)

    # ---- expand 1x1 conv + folded BN + ReLU6 (lane-dense MXU matmul) ----
    if has_expand:
        h = jnp.dot(x.reshape(H * W, Cp), we_ref[...],
                    preferred_element_type=jnp.float32)
        h = jnp.clip(h * se_ref[...] + be_ref[...], 0.0, 6.0)
        h = h.reshape(H, W, Hd)
    else:
        h = x                                               # hidden == in channels

    # ---- in-kernel zero pad (padding=1) into VMEM scratch; no HBM jnp.pad ----
    pad_ref[...] = jnp.zeros_like(pad_ref)
    pad_ref[pl.ds(1, H), pl.ds(1, W), :] = h.astype(pad_ref.dtype)

    # ---- 3x3 depthwise conv + folded BN + ReLU6 (9 VPU broadcast-FMAs) ----
    xp = pad_ref[...]                                       # (H+2, W+2, Hd)
    acc = jnp.zeros((Ho, Wo, Hd), jnp.float32)
    for kh in range(3):
        for kw in range(3):
            patch = xp[kh:kh + stride * Ho:stride,
                       kw:kw + stride * Wo:stride, :]
            acc = acc + patch * wd_ref[kh * 3 + kw]
    d = jnp.clip(acc * sd_ref[0] + bd_ref[0], 0.0, 6.0)

    # ---- project 1x1 conv + folded BN (+ residual), lane-dense store ----
    y = jnp.dot(d.reshape(Ho * Wo, Hd), wp_ref[...],
                preferred_element_type=jnp.float32)
    y = y * sp_ref[...] + bp_ref[...]
    if shortcut:
        y = y + x.reshape(H * W, Cp)          # Cp == Cop when shortcut holds
    o_ref[0] = y.reshape(Ho, Wo, Cop).astype(o_ref.dtype)


# ----------------------------------------------------------------------------
# Wrapper: NCHW in/out, channel padding to 128 lanes done once here.
# ----------------------------------------------------------------------------
def inverted_residual_forward(x_nchw, params, *, in_c, out_c, stride, expand_ratio):
    shortcut = (stride == 1) and (in_c == out_c)
    has_expand = expand_ratio != 1
    hidden = in_c * expand_ratio

    x = jnp.transpose(x_nchw, (0, 2, 3, 1)).astype(jnp.float32)   # NCHW -> NHWC
    N, H, W, _ = x.shape
    Ho = (H + 2 - 3) // stride + 1
    Wo = (W + 2 - 3) // stride + 1

    Cp = _round_up(in_c, 128)
    Hd = _round_up(hidden, 128)
    Cop = _round_up(out_c, 128)

    # Lane-dense channel layout: pad channels to a multiple of 128 once; pad
    # lanes carry zeros through the whole fused block and are sliced off after.
    xp = jnp.pad(x, ((0, 0), (0, 0), (0, 0), (0, Cp - in_c)))

    def pad2(a, r, c):
        return jnp.zeros((r, c), jnp.float32).at[:a.shape[0], :a.shape[1]].set(a)

    args = [xp]
    in_specs = [pl.BlockSpec((1, H, W, Cp), lambda n: (n, 0, 0, 0))]

    if has_expand:
        we, se, be = params["expand"]
        args += [pad2(we, Cp, Hd), pad2(se, 1, Hd), pad2(be, 1, Hd)]
        in_specs += [pl.BlockSpec((Cp, Hd), lambda n: (0, 0)),
                     pl.BlockSpec((1, Hd), lambda n: (0, 0)),
                     pl.BlockSpec((1, Hd), lambda n: (0, 0))]

    wd, sd, bd = params["dw"]
    args += [pad2(wd, 9, Hd), pad2(sd, 1, Hd), pad2(bd, 1, Hd)]
    in_specs += [pl.BlockSpec((9, Hd), lambda n: (0, 0)),
                 pl.BlockSpec((1, Hd), lambda n: (0, 0)),
                 pl.BlockSpec((1, Hd), lambda n: (0, 0))]

    wp, sp, bp = params["project"]
    args += [pad2(wp, Hd, Cop), pad2(sp, 1, Cop), pad2(bp, 1, Cop)]
    in_specs += [pl.BlockSpec((Hd, Cop), lambda n: (0, 0)),
                 pl.BlockSpec((1, Cop), lambda n: (0, 0)),
                 pl.BlockSpec((1, Cop), lambda n: (0, 0))]

    out_specs = pl.BlockSpec((1, Ho, Wo, Cop), lambda n: (n, 0, 0, 0))

    # VMEM budget from actual per-step tile sizes (double-buffered I/O +
    # scratch + weights + live intermediates), clamped to stay portable to
    # v7x's 64 MiB physical VMEM.
    est = 4 * (2 * H * W * Cp + 2 * Ho * Wo * Cop
               + (H + 2) * (W + 2) * Hd
               + Cp * Hd + 9 * Hd + Hd * Cop + 6 * max(Hd, Cop)
               + 2 * H * W * Hd)
    vmem_limit = int(min(max(2 * est, 8 << 20), 48 << 20))

    kernel = functools.partial(_fused_kernel, H=H, W=W, Ho=Ho, Wo=Wo,
                               stride=stride, has_expand=has_expand,
                               shortcut=shortcut)

    # TODO(synk): at full MobileNet resolutions (112x112+) additionally tile
    # the grid over output-row blocks (with 1-row halos) to bound per-step
    # VMEM; at the sizes exercised here one image per step fits comfortably.
    # TODO(synk): store activations/weights in bf16 for production to halve
    # HBM traffic (kept f32 here for bit-tight correctness checking).
    y = pl.pallas_call(
        kernel,
        out_shape=jax.ShapeDtypeStruct((N, Ho, Wo, Cop), jnp.float32),
        grid_spec=pltpu.PrefetchScalarGridSpec(
            num_scalar_prefetch=0,
            grid=(N,),
            in_specs=in_specs,
            out_specs=out_specs,
            scratch_shapes=[pltpu.VMEM((H + 2, W + 2, Hd), jnp.float32)],
        ),
        compiler_params=pltpu.CompilerParams(
            dimension_semantics=("parallel",),
            vmem_limit_bytes=vmem_limit),
    )(*args)

    y = y[..., :out_c]                        # drop channel padding
    return jnp.transpose(y, (0, 3, 1, 2))     # NHWC -> NCHW


# ----------------------------------------------------------------------------
# Parameter init (PyTorch-shaped weights, BN folded to scale/bias).
# ----------------------------------------------------------------------------
def _fold_bn(gamma, beta, mean, var, eps=1e-5):
    scale = gamma / jnp.sqrt(var + eps)
    bias = beta - mean * scale
    return scale.reshape(1, -1), bias.reshape(1, -1)


def init_inverted_residual_params(key, in_c, out_c, expand_ratio):
    hidden = in_c * expand_ratio
    ks = jax.random.split(key, 15)
    params = {}

    def bn_params(k0, k1, k2, k3, c):
        gamma = 1.0 + 0.1 * jax.random.normal(k0, (c,), jnp.float32)
        beta = 0.1 * jax.random.normal(k1, (c,), jnp.float32)
        mean = 0.1 * jax.random.normal(k2, (c,), jnp.float32)
        var = jax.random.uniform(k3, (c,), jnp.float32, minval=0.5, maxval=1.5)
        return _fold_bn(gamma, beta, mean, var)

    if expand_ratio != 1:
        # Conv2d(in_c, hidden, 1) weight (hidden, in_c, 1, 1) -> (in_c, hidden)
        w1 = 0.2 * jax.random.normal(ks[0], (in_c, hidden), jnp.float32)
        s1, b1 = bn_params(ks[1], ks[2], ks[3], ks[4], hidden)
        params["expand"] = (w1, s1, b1)

    # depthwise Conv2d(hidden, hidden, 3, groups=hidden) (hidden,1,3,3) -> (9, hidden)
    w2 = 0.2 * jax.random.normal(ks[5], (9, hidden), jnp.float32)
    s2, b2 = bn_params(ks[6], ks[7], ks[8], ks[9], hidden)
    params["dw"] = (w2, s2, b2)

    # projection Conv2d(hidden, out_c, 1) weight (out_c, hidden, 1, 1) -> (hidden, out_c)
    w3 = 0.2 * jax.random.normal(ks[10], (hidden, out_c), jnp.float32)
    s3, b3 = bn_params(ks[11], ks[12], ks[13], ks[14], out_c)
    params["project"] = (w3, s3, b3)
    return params


# ----------------------------------------------------------------------------
# Pure-JAX reference (correctness check).
# ----------------------------------------------------------------------------
def reference_forward(x_nchw, params, *, in_c, out_c, stride, expand_ratio):
    x = jnp.transpose(x_nchw, (0, 2, 3, 1)).astype(jnp.float32)
    h = x
    if expand_ratio != 1:
        w, s, b = params["expand"]
        h = jnp.clip(jnp.einsum("nhwc,cd->nhwd", h, w) * s[0] + b[0], 0.0, 6.0)
    w9, s, b = params["dw"]
    N, H, W, C = h.shape
    hp = jnp.pad(h, ((0, 0), (1, 1), (1, 1), (0, 0)))
    Ho = (H + 2 - 3) // stride + 1
    Wo = (W + 2 - 3) // stride + 1
    acc = jnp.zeros((N, Ho, Wo, C), jnp.float32)
    for kh in range(3):
        for kw in range(3):
            acc = acc + hp[:, kh:kh + stride * Ho:stride,
                           kw:kw + stride * Wo:stride, :] * w9[kh * 3 + kw]
    h = jnp.clip(acc * s[0] + b[0], 0.0, 6.0)
    w, s, b = params["project"]
    y = jnp.einsum("nhwc,cd->nhwd", h, w) * s[0] + b[0]
    if stride == 1 and in_c == out_c:
        y = y + x
    return jnp.transpose(y, (0, 3, 1, 2))


# ----------------------------------------------------------------------------
if __name__ == "__main__":
    # Config: stride=1, in==out -> shortcut path (classic MobileNetV2 bottleneck)
    IN_C, OUT_C, STRIDE, EXPAND = 4, 4, 1, 6
    N, H, W = 2, 16, 16

    key = jax.random.PRNGKey(0)
    k_x, k_p = jax.random.split(key)
    x = jax.random.normal(k_x, (N, IN_C, H, W), jnp.float32)  # PyTorch NCHW input
    params = init_inverted_residual_params(k_p, IN_C, OUT_C, EXPAND)

    out = inverted_residual_forward(
        x, params, in_c=IN_C, out_c=OUT_C, stride=STRIDE, expand_ratio=EXPAND)
    out = jax.block_until_ready(out)

    ref = reference_forward(
        x, params, in_c=IN_C, out_c=OUT_C, stride=STRIDE, expand_ratio=EXPAND)
    assert out.shape == (N, OUT_C, H, W), out.shape
    assert jnp.allclose(out, ref, atol=1e-4, rtol=1e-4), \
        float(jnp.max(jnp.abs(out - ref)))

    print("KERNEL_OK")
</pallas_src>

<mosaic_0001>
module attributes {stable_mosaic.version = 11 : i64} {
  func.func @_fused_kernel(%arg0: i32, %arg1: memref<1x16x16x128xf32, #tpu.memory_space<vmem>>, %arg2: memref<128x128xf32, #tpu.memory_space<vmem>>, %arg3: memref<1x128xf32, #tpu.memory_space<vmem>>, %arg4: memref<1x128xf32, #tpu.memory_space<vmem>>, %arg5: memref<9x128xf32, #tpu.memory_space<vmem>>, %arg6: memref<1x128xf32, #tpu.memory_space<vmem>>, %arg7: memref<1x128xf32, #tpu.memory_space<vmem>>, %arg8: memref<128x128xf32, #tpu.memory_space<vmem>>, %arg9: memref<1x128xf32, #tpu.memory_space<vmem>>, %arg10: memref<1x128xf32, #tpu.memory_space<vmem>>, %arg11: memref<1x16x16x128xf32, #tpu.memory_space<vmem>>, %arg12: memref<18x18x128xf32, #tpu.memory_space<vmem>>) attributes {dimension_semantics = [#tpu.dimension_semantics<parallel>], iteration_bounds = array<i64: 2>, scalar_prefetch = 0 : i64, scratch_operands = 1 : i64, tpu.core_type = #tpu.core_type<tc>, window_params = [{transform_indices = @transform_0, window_bounds = array<i64: 1, 16, 16, 128>}, {pipeline_mode = #tpu.pipeline_mode<synchronous>, transform_indices = @transform_1, window_bounds = array<i64: 128, 128>}, {pipeline_mode = #tpu.pipeline_mode<synchronous>, transform_indices = @transform_2, window_bounds = array<i64: 1, 128>}, {pipeline_mode = #tpu.pipeline_mode<synchronous>, transform_indices = @transform_3, window_bounds = array<i64: 1, 128>}, {pipeline_mode = #tpu.pipeline_mode<synchronous>, transform_indices = @transform_4, window_bounds = array<i64: 9, 128>}, {pipeline_mode = #tpu.pipeline_mode<synchronous>, transform_indices = @transform_5, window_bounds = array<i64: 1, 128>}, {pipeline_mode = #tpu.pipeline_mode<synchronous>, transform_indices = @transform_6, window_bounds = array<i64: 1, 128>}, {pipeline_mode = #tpu.pipeline_mode<synchronous>, transform_indices = @transform_7, window_bounds = array<i64: 128, 128>}, {pipeline_mode = #tpu.pipeline_mode<synchronous>, transform_indices = @transform_8, window_bounds = array<i64: 1, 128>}, {pipeline_mode = #tpu.pipeline_mode<synchronous>, transform_indices = @transform_9, window_bounds = array<i64: 1, 128>}, {transform_indices = @transform_10, window_bounds = array<i64: 1, 16, 16, 128>}]} {
    %c0 = arith.constant 0 : index
    %c0_0 = arith.constant 0 : index
    %c0_1 = arith.constant 0 : index
    %c0_2 = arith.constant 0 : index
    %0 = vector.load %arg1[%c0, %c0_0, %c0_1, %c0_2] : memref<1x16x16x128xf32, #tpu.memory_space<vmem>>, vector<1x16x16x128xf32>
    %1 = vector.shape_cast %0 : vector<1x16x16x128xf32> to vector<16x16x128xf32>
    %2 = vector.shape_cast %1 : vector<16x16x128xf32> to vector<256x128xf32>
    %c0_3 = arith.constant 0 : index
    %c0_4 = arith.constant 0 : index
    %3 = vector.load %arg2[%c0_3, %c0_4] : memref<128x128xf32, #tpu.memory_space<vmem>>, vector<128x128xf32>
    %cst = arith.constant dense<0.000000e+00> : vector<256x128xf32>
    %4 = tpu.matmul %2, %3, %cst {dimension_numbers = #tpu.dot_dimension_numbers<[1], [0], [0], [1], [0, 0, 1, 1], [], []>} : vector<256x128xf32>, vector<128x128xf32>, vector<256x128xf32> -> vector<256x128xf32>
    %c0_5 = arith.constant 0 : index
    %c0_6 = arith.constant 0 : index
    %5 = vector.load %arg3[%c0_5, %c0_6] : memref<1x128xf32, #tpu.memory_space<vmem>>, vector<1x128xf32>
    %6 = vector.broadcast %5 : vector<1x128xf32> to vector<256x128xf32>
    %7 = arith.mulf %4, %6 : vector<256x128xf32>
    %c0_7 = arith.constant 0 : index
    %c0_8 = arith.constant 0 : index
    %8 = vector.load %arg4[%c0_7, %c0_8] : memref<1x128xf32, #tpu.memory_space<vmem>>, vector<1x128xf32>
    %9 = vector.broadcast %8 : vector<1x128xf32> to vector<256x128xf32>
    %10 = arith.addf %7, %9 : vector<256x128xf32>
    %cst_9 = arith.constant 0.000000e+00 : f32
    %cst_10 = arith.constant 6.000000e+00 : f32
    %11 = vector.broadcast %cst_9 : f32 to vector<256x128xf32>
    %12 = arith.maximumf %11, %10 : vector<256x128xf32>
    %13 = vector.broadcast %cst_10 : f32 to vector<256x128xf32>
    %14 = arith.minimumf %13, %12 : vector<256x128xf32>
    %15 = vector.shape_cast %14 : vector<256x128xf32> to vector<16x16x128xf32>
    %cst_11 = arith.constant 0.000000e+00 : f32
    %16 = vector.broadcast %cst_11 : f32 to vector<18x18x128xf32>
    %c0_12 = arith.constant 0 : index
    %c0_13 = arith.constant 0 : index
    %c0_14 = arith.constant 0 : index
    %17 = vector.load %arg12[%c0_12, %c0_13, %c0_14] : memref<18x18x128xf32, #tpu.memory_space<vmem>>, vector<18x18x128xf32>
    tpu.vector_store %arg12[%c0_12, %c0_13, %c0_14], %16 {strides = array<i32>} : memref<18x18x128xf32, #tpu.memory_space<vmem>>, vector<18x18x128xf32>,
    %c1 = arith.constant 1 : index
    %c1_15 = arith.constant 1 : index
    %c0_16 = arith.constant 0 : index
    %18 = vector.load %arg12[%c1, %c1_15, %c0_16] : memref<18x18x128xf32, #tpu.memory_space<vmem>>, vector<16x16x128xf32>
    tpu.vector_store %arg12[%c1, %c1_15, %c0_16], %15 {strides = array<i32>} : memref<18x18x128xf32, #tpu.memory_space<vmem>>, vector<16x16x128xf32>,
    %c0_17 = arith.constant 0 : index
    %c0_18 = arith.constant 0 : index
    %c0_19 = arith.constant 0 : index
    %19 = vector.load %arg12[%c0_17, %c0_18, %c0_19] : memref<18x18x128xf32, #tpu.memory_space<vmem>>, vector<18x18x128xf32>
    %cst_20 = arith.constant 0.000000e+00 : f32
    %20 = vector.broadcast %cst_20 : f32 to vector<16x16x128xf32>
    %21 = vector.extract_strided_slice %19 {offsets = [0, 0, 0], sizes = [16, 16, 128], strides = [1, 1, 1]} : vector<18x18x128xf32> to vector<16x16x128xf32>
    %c0_21 = arith.constant 0 : index
    %c0_22 = arith.constant 0 : index
    %22 = vector.load %arg5[%c0_21, %c0_22] : memref<9x128xf32, #tpu.memory_space<vmem>>, vector<1x128xf32>
    %23 = vector.shape_cast %22 : vector<1x128xf32> to vector<128xf32>
    %24 = vector.shape_cast %23 : vector<128xf32> to vector<1x1x128xf32>
    %25 = vector.broadcast %24 : vector<1x1x128xf32> to vector<16x16x128xf32>
    %26 = arith.mulf %21, %25 : vector<16x16x128xf32>
    %27 = arith.addf %20, %26 : vector<16x16x128xf32>
    %28 = vector.extract_strided_slice %19 {offsets = [0, 1, 0], sizes = [16, 16, 128], strides = [1, 1, 1]} : vector<18x18x128xf32> to vector<16x16x128xf32>
    %c1_23 = arith.constant 1 : index
    %c0_24 = arith.constant 0 : index
    %29 = vector.load %arg5[%c1_23, %c0_24] : memref<9x128xf32, #tpu.memory_space<vmem>>, vector<1x128xf32>
    %30 = vector.shape_cast %29 : vector<1x128xf32> to vector<128xf32>
    %31 = vector.shape_cast %30 : vector<128xf32> to vector<1x1x128xf32>
    %32 = vector.broadcast %31 : vector<1x1x128xf32> to vector<16x16x128xf32>
    %33 = arith.mulf %28, %32 : vector<16x16x128xf32>
    %34 = arith.addf %27, %33 : vector<16x16x128xf32>
    %35 = vector.extract_strided_slice %19 {offsets = [0, 2, 0], sizes = [16, 16, 128], strides = [1, 1, 1]} : vector<18x18x128xf32> to vector<16x16x128xf32>
    %c2 = arith.constant 2 : index
    %c0_25 = arith.constant 0 : index
    %36 = vector.load %arg5[%c2, %c0_25] : memref<9x128xf32, #tpu.memory_space<vmem>>, vector<1x128xf32>
    %37 = vector.shape_cast %36 : vector<1x128xf32> to vector<128xf32>
    %38 = vector.shape_cast %37 : vector<128xf32> to vector<1x1x128xf32>
    %39 = vector.broadcast %38 : vector<1x1x128xf32> to vector<16x16x128xf32>
    %40 = arith.mulf %35, %39 : vector<16x16x128xf32>
    %41 = arith.addf %34, %40 : vector<16x16x128xf32>
    %42 = vector.extract_strided_slice %19 {offsets = [1, 0, 0], sizes = [16, 16, 128], strides = [1, 1, 1]} : vector<18x18x128xf32> to vector<16x16x128xf32>
    %c3 = arith.constant 3 : index
    %c0_26 = arith.constant 0 : index
    %43 = vector.load %arg5[%c3, %c0_26] : memref<9x128xf32, #tpu.memory_space<vmem>>, vector<1x128xf32>
    %44 = vector.shape_cast %43 : vector<1x128xf32> to vector<128xf32>
    %45 = vector.shape_cast %44 : vector<128xf32> to vector<1x1x128xf32>
    %46 = vector.broadcast %45 : vector<1x1x128xf32> to vector<16x16x128xf32>
    %47 = arith.mulf %42, %46 : vector<16x16x128xf32>
    %48 = arith.addf %41, %47 : vector<16x16x128xf32>
    %49 = vector.extract_strided_slice %19 {offsets = [1, 1, 0], sizes = [16, 16, 128], strides = [1, 1, 1]} : vector<18x18x128xf32> to vector<16x16x128xf32>
    %c4 = arith.constant 4 : index
    %c0_27 = arith.constant 0 : index
    %50 = vector.load %arg5[%c4, %c0_27] : memref<9x128xf32, #tpu.memory_space<vmem>>, vector<1x128xf32>
    %51 = vector.shape_cast %50 : vector<1x128xf32> to vector<128xf32>
    %52 = vector.shape_cast %51 : vector<128xf32> to vector<1x1x128xf32>
    %53 = vector.broadcast %52 : vector<1x1x128xf32> to vector<16x16x128xf32>
    %54 = arith.mulf %49, %53 : vector<16x16x128xf32>
    %55 = arith.addf %48, %54 : vector<16x16x128xf32>
    %56 = vector.extract_strided_slice %19 {offsets = [1, 2, 0], sizes = [16, 16, 128], strides = [1, 1, 1]} : vector<18x18x128xf32> to vector<16x16x128xf32>
    %c5 = arith.constant 5 : index
    %c0_28 = arith.constant 0 : index
    %57 = vector.load %arg5[%c5, %c0_28] : memref<9x128xf32, #tpu.memory_space<vmem>>, vector<1x128xf32>
    %58 = vector.shape_cast %57 : vector<1x128xf32> to vector<128xf32>
    %59 = vector.shape_cast %58 : vector<128xf32> to vector<1x1x128xf32>
    %60 = vector.broadcast %59 : vector<1x1x128xf32> to vector<16x16x128xf32>
    %61 = arith.mulf %56, %60 : vector<16x16x128xf32>
    %62 = arith.addf %55, %61 : vector<16x16x128xf32>
    %63 = vector.extract_strided_slice %19 {offsets = [2, 0, 0], sizes = [16, 16, 128], strides = [1, 1, 1]} : vector<18x18x128xf32> to vector<16x16x128xf32>
    %c6 = arith.constant 6 : index
    %c0_29 = arith.constant 0 : index
    %64 = vector.load %arg5[%c6, %c0_29] : memref<9x128xf32, #tpu.memory_space<vmem>>, vector<1x128xf32>
    %65 = vector.shape_cast %64 : vector<1x128xf32> to vector<128xf32>
    %66 = vector.shape_cast %65 : vector<128xf32> to vector<1x1x128xf32>
    %67 = vector.broadcast %66 : vector<1x1x128xf32> to vector<16x16x128xf32>
    %68 = arith.mulf %63, %67 : vector<16x16x128xf32>
    %69 = arith.addf %62, %68 : vector<16x16x128xf32>
    %70 = vector.extract_strided_slice %19 {offsets = [2, 1, 0], sizes = [16, 16, 128], strides = [1, 1, 1]} : vector<18x18x128xf32> to vector<16x16x128xf32>
    %c7 = arith.constant 7 : index
    %c0_30 = arith.constant 0 : index
    %71 = vector.load %arg5[%c7, %c0_30] : memref<9x128xf32, #tpu.memory_space<vmem>>, vector<1x128xf32>
    %72 = vector.shape_cast %71 : vector<1x128xf32> to vector<128xf32>
    %73 = vector.shape_cast %72 : vector<128xf32> to vector<1x1x128xf32>
    %74 = vector.broadcast %73 : vector<1x1x128xf32> to vector<16x16x128xf32>
    %75 = arith.mulf %70, %74 : vector<16x16x128xf32>
    %76 = arith.addf %69, %75 : vector<16x16x128xf32>
    %77 = vector.extract_strided_slice %19 {offsets = [2, 2, 0], sizes = [16, 16, 128], strides = [1, 1, 1]} : vector<18x18x128xf32> to vector<16x16x128xf32>
    %c8 = arith.constant 8 : index
    %c0_31 = arith.constant 0 : index
    %78 = vector.load %arg5[%c8, %c0_31] : memref<9x128xf32, #tpu.memory_space<vmem>>, vector<1x128xf32>
    %79 = vector.shape_cast %78 : vector<1x128xf32> to vector<128xf32>
    %80 = vector.shape_cast %79 : vector<128xf32> to vector<1x1x128xf32>
    %81 = vector.broadcast %80 : vector<1x1x128xf32> to vector<16x16x128xf32>
    %82 = arith.mulf %77, %81 : vector<16x16x128xf32>
    %83 = arith.addf %76, %82 : vector<16x16x128xf32>
    %c0_32 = arith.constant 0 : index
    %c0_33 = arith.constant 0 : index
    %84 = vector.load %arg6[%c0_32, %c0_33] : memref<1x128xf32, #tpu.memory_space<vmem>>, vector<1x128xf32>
    %85 = vector.shape_cast %84 : vector<1x128xf32> to vector<128xf32>
    %86 = vector.shape_cast %85 : vector<128xf32> to vector<1x1x128xf32>
    %87 = vector.broadcast %86 : vector<1x1x128xf32> to vector<16x16x128xf32>
    %88 = arith.mulf %83, %87 : vector<16x16x128xf32>
    %c0_34 = arith.constant 0 : index
    %c0_35 = arith.constant 0 : index
    %89 = vector.load %arg7[%c0_34, %c0_35] : memref<1x128xf32, #tpu.memory_space<vmem>>, vector<1x128xf32>
    %90 = vector.shape_cast %89 : vector<1x128xf32> to vector<128xf32>
    %91 = vector.shape_cast %90 : vector<128xf32> to vector<1x1x128xf32>
    %92 = vector.broadcast %91 : vector<1x1x128xf32> to vector<16x16x128xf32>
    %93 = arith.addf %88, %92 : vector<16x16x128xf32>
    %cst_36 = arith.constant 0.000000e+00 : f32
    %cst_37 = arith.constant 6.000000e+00 : f32
    %94 = vector.broadcast %cst_36 : f32 to vector<16x16x128xf32>
    %95 = arith.maximumf %94, %93 : vector<16x16x128xf32>
    %96 = vector.broadcast %cst_37 : f32 to vector<16x16x128xf32>
    %97 = arith.minimumf %96, %95 : vector<16x16x128xf32>
    %98 = vector.shape_cast %97 : vector<16x16x128xf32> to vector<256x128xf32>
    %c0_38 = arith.constant 0 : index
    %c0_39 = arith.constant 0 : index
    %99 = vector.load %arg8[%c0_38, %c0_39] : memref<128x128xf32, #tpu.memory_space<vmem>>, vector<128x128xf32>
    %cst_40 = arith.constant dense<0.000000e+00> : vector<256x128xf32>
    %100 = tpu.matmul %98, %99, %cst_40 {dimension_numbers = #tpu.dot_dimension_numbers<[1], [0], [0], [1], [0, 0, 1, 1], [], []>} : vector<256x128xf32>, vector<128x128xf32>, vector<256x128xf32> -> vector<256x128xf32>
    %c0_41 = arith.constant 0 : index
    %c0_42 = arith.constant 0 : index
    %101 = vector.load %arg9[%c0_41, %c0_42] : memref<1x128xf32, #tpu.memory_space<vmem>>, vector<1x128xf32>
    %102 = vector.broadcast %101 : vector<1x128xf32> to vector<256x128xf32>
    %103 = arith.mulf %100, %102 : vector<256x128xf32>
    %c0_43 = arith.constant 0 : index
    %c0_44 = arith.constant 0 : index
    %104 = vector.load %arg10[%c0_43, %c0_44] : memref<1x128xf32, #tpu.memory_space<vmem>>, vector<1x128xf32>
    %105 = vector.broadcast %104 : vector<1x128xf32> to vector<256x128xf32>
    %106 = arith.addf %103, %105 : vector<256x128xf32>
    %107 = vector.shape_cast %1 : vector<16x16x128xf32> to vector<256x128xf32>
    %108 = arith.addf %106, %107 : vector<256x128xf32>
    %109 = vector.shape_cast %108 : vector<256x128xf32> to vector<16x16x128xf32>
    %c0_45 = arith.constant 0 : index
    %c0_46 = arith.constant 0 : index
    %c0_47 = arith.constant 0 : index
    %c0_48 = arith.constant 0 : index
    %110 = vector.load %arg11[%c0_45, %c0_46, %c0_47, %c0_48] : memref<1x16x16x128xf32, #tpu.memory_space<vmem>>, vector<1x16x16x128xf32>
    %111 = vector.shape_cast %110 : vector<1x16x16x128xf32> to vector<16x16x128xf32>
    %112 = vector.shape_cast %109 : vector<16x16x128xf32> to vector<1x16x16x128xf32>
    tpu.vector_store %arg11[%c0_45, %c0_46, %c0_47, %c0_48], %112 {strides = array<i32>} : memref<1x16x16x128xf32, #tpu.memory_space<vmem>>, vector<1x16x16x128xf32>,
    return
  }
  func.func @transform_0(%arg0: i32) -> (i32, i32, i32, i32) {
    %c0_i32 = arith.constant 0 : i32
    %c0_i32_0 = arith.constant 0 : i32
    %c0_i32_1 = arith.constant 0 : i32
    %c0_i32_2 = arith.constant 0 : i32
    return %arg0, %c0_i32, %c0_i32_0, %c0_i32_1 : i32, i32, i32, i32
  }
  func.func @transform_1(%arg0: i32) -> (i32, i32) {
    %c0_i32 = arith.constant 0 : i32
    %c0_i32_0 = arith.constant 0 : i32
    %c0_i32_1 = arith.constant 0 : i32
    return %c0_i32, %c0_i32_0 : i32, i32
  }
  func.func @transform_2(%arg0: i32) -> (i32, i32) {
    %c0_i32 = arith.constant 0 : i32
    %c0_i32_0 = arith.constant 0 : i32
    %c0_i32_1 = arith.constant 0 : i32
    return %c0_i32, %c0_i32_0 : i32, i32
  }
  func.func @transform_3(%arg0: i32) -> (i32, i32) {
    %c0_i32 = arith.constant 0 : i32
    %c0_i32_0 = arith.constant 0 : i32
    %c0_i32_1 = arith.constant 0 : i32
    return %c0_i32, %c0_i32_0 : i32, i32
  }
  func.func @transform_4(%arg0: i32) -> (i32, i32) {
    %c0_i32 = arith.constant 0 : i32
    %c0_i32_0 = arith.constant 0 : i32
    %c0_i32_1 = arith.constant 0 : i32
    return %c0_i32, %c0_i32_0 : i32, i32
  }
  func.func @transform_5(%arg0: i32) -> (i32, i32) {
    %c0_i32 = arith.constant 0 : i32
    %c0_i32_0 = arith.constant 0 : i32
    %c0_i32_1 = arith.constant 0 : i32
    return %c0_i32, %c0_i32_0 : i32, i32
  }
  func.func @transform_6(%arg0: i32) -> (i32, i32) {
    %c0_i32 = arith.constant 0 : i32
    %c0_i32_0 = arith.constant 0 : i32
    %c0_i32_1 = arith.constant 0 : i32
    return %c0_i32, %c0_i32_0 : i32, i32
  }
  func.func @transform_7(%arg0: i32) -> (i32, i32) {
    %c0_i32 = arith.constant 0 : i32
    %c0_i32_0 = arith.constant 0 : i32
    %c0_i32_1 = arith.constant 0 : i32
    return %c0_i32, %c0_i32_0 : i32, i32
  }
  func.func @transform_8(%arg0: i32) -> (i32, i32) {
    %c0_i32 = arith.constant 0 : i32
    %c0_i32_0 = arith.constant 0 : i32
    %c0_i32_1 = arith.constant 0 : i32
    return %c0_i32, %c0_i32_0 : i32, i32
  }
  func.func @transform_9(%arg0: i32) -> (i32, i32) {
    %c0_i32 = arith.constant 0 : i32
    %c0_i32_0 = arith.constant 0 : i32
    %c0_i32_1 = arith.constant 0 : i32
    return %c0_i32, %c0_i32_0 : i32, i32
  }
  func.func @transform_10(%arg0: i32) -> (i32, i32, i32, i32) {
    %c0_i32 = arith.constant 0 : i32
    %c0_i32_0 = arith.constant 0 : i32
    %c0_i32_1 = arith.constant 0 : i32
    %c0_i32_2 = arith.constant 0 : i32
    return %arg0, %c0_i32, %c0_i32_0, %c0_i32_1 : i32, i32, i32, i32
  }
}

</mosaic_0001>

<llo_original>
// kernel: tpu_custom_call.1
$region0: #{tpu_custom_call.1}
  #allocation0 [shape = 'u32[]', space=smem, size = 0x4, offset = 0x4, fixed_abs, tag = 'smem constant byte address 0x4 - core index']
  #allocation1 [shape = 'u32[144,128]{1,0:T(1,128)}', space=vmem, size = 0x12000, scoped, tag = 'internal scratch']
  #allocation2 [shape = 'f32[18,18,128]{2,1,0:T(8,128)}', space=vmem, size = 0x36000, scoped, tag = 'scratch operand']
  %s0 = inlined_call_operand.hbm [shape: f32[2,16,16,128], index: 0, kind: input, shape index: {}]
  %s1 = inlined_call_operand.hbm [shape: f32[128,128], index: 1, kind: input, shape index: {}]
  %s2 = inlined_call_operand.vmem [shape: f32[1,128], index: 2, kind: input, shape index: {}]
  %s3 = inlined_call_operand.vmem [shape: f32[1,128], index: 3, kind: input, shape index: {}]
  %s4 = inlined_call_operand.hbm [shape: f32[9,128], index: 4, kind: input, shape index: {}]
  %s5 = inlined_call_operand.vmem [shape: f32[1,128], index: 5, kind: input, shape index: {}]
  %s6 = inlined_call_operand.vmem [shape: f32[1,128], index: 6, kind: input, shape index: {}]
  %s7 = inlined_call_operand.hbm [shape: f32[128,128], index: 7, kind: input, shape index: {}]
  %s8 = inlined_call_operand.vmem [shape: f32[1,128], index: 8, kind: input, shape index: {}]
  %s9 = inlined_call_operand.vmem [shape: f32[1,128], index: 9, kind: input, shape index: {}]
  %s10 = inlined_call_operand.hbm [shape: f32[2,16,16,128], index: 10, kind: output, shape index: {}]
  %s11 = sld [smem:[#allocation0]]
  $region89: #{tpu_custom_call.1} parent=0
    _
  %s13 = ssub.s32 1, %s11
  %s14 = scalar_select 0, %s13, %s11
  $region1: #{tpu_custom_call.1} parent=0
    #allocation3 [shape = 'u8[262144]{0}', space=vmem, size = 0x40000, scoped, tag = 'input window, operand 0']
    #allocation4 [shape = 's32[2]{0}', space=sflag, size = 0x8, scoped, tag = 'scoped memory for tpu_custom_call.1']
    #allocation5 [shape = 's32[2]{0}', space=sflag, size = 0x8, scoped, tag = 'scoped memory for tpu_custom_call.1']
    #allocation6 [shape = 'u8[65536]{0}', space=vmem, size = 0x10000, scoped, tag = 'input window, operand 1, single buffered']
    #allocation7 [shape = 's32[1]{0}', space=sflag, size = 0x4, scoped, tag = 'scoped memory for tpu_custom_call.1']
    #allocation8 [shape = 'u8[8192]{0}', space=vmem, size = 0x2000, scoped, tag = 'input window, operand 4, single buffered']
    #allocation9 [shape = 'u8[65536]{0}', space=vmem, size = 0x10000, scoped, tag = 'input window, operand 7, single buffered']
    #allocation10 [shape = 's32[1]{0}', space=sflag, size = 0x4, scoped, tag = 'scoped memory for tpu_custom_call.1']
    #allocation11 [shape = 'u8[262144]{0}', space=vmem, size = 0x40000, scoped, tag = 'output window, operand 0']
    %15 = vsyncpa [#allocation4], 0
    %s16 = scalar_lea.sflag [#allocation4], 1
    %17 = vsyncpa %s16, 0
    %18 = vsyncpa [#allocation7], 0
    %19 = vsyncpa [#allocation10], 0
    %20 = vsyncpa [#allocation5], 0
    %s21 = scalar_lea.sflag [#allocation5], 1
    %22 = vsyncpa %s21, 0
    loop: start=0, step=1, limit=4
    $region2: #{tpu_custom_call.1} parent=1 // loop_pre_header
      _
    $region3: #{tpu_custom_call.1} parent=1 // loop_header
      %s24 = sphi 0, %s28
      %p25 = scmp.ge.s32.totalorder %s24, 4
      %s34 = sphi 0, %s36
      %s37 = sphi 0, %s34
      %s38 = sphi 0, %s37
      %s54 = sphi 0, %s38
      %s58 = sphi 0, %s58
      %s60 = sphi 0, %s58
      %s61 = sphi 0, %s60
      %s75 = sphi 0, %s61
      %s79 = sphi 0, %s79
      %s81 = sphi 0, %s79
      %s82 = sphi 0, %s81
      %s96 = sphi 0, %s82
      %s100 = sphi 0, %s100
      %s102 = sphi 0, %s100
      %s103 = sphi 0, %s102
      %s117 = sphi 0, %s103
      %s121 = sphi 0, %s121
      %s123 = sphi 0, %s121
      %s124 = sphi 0, %s123
      %s138 = sphi 0, %s124
      %s142 = sphi 0, %s142
      %s144 = sphi 0, %s142
      %s145 = sphi 0, %s144
      %s159 = sphi 0, %s145
      %s163 = sphi 0, %s163
      %s165 = sphi 0, %s163
      %s166 = sphi 0, %s165
      %s180 = sphi 0, %s166
      %s184 = sphi 0, %s184
      %s186 = sphi 0, %s184
      %s187 = sphi 0, %s186
      %s201 = sphi 0, %s187
      %s205 = sphi 0, %s205
      %s207 = sphi 0, %s205
      %s208 = sphi 0, %s207
      %s222 = sphi 0, %s208
      %s226 = sphi 0, %s226
      %s228 = sphi 0, %s226
      %s229 = sphi 0, %s228
      %s243 = sphi 0, %s229
      %s249 = sphi 0, %s251
      %s252 = sphi 0, %s249
      %s253 = sphi 0, %s252
      %s269 = sphi 0, %s253
    $region4: #{tpu_custom_call.1} parent=1 // loop_header_branch
      %27 = sbr.rel (%p25) target = $region8
    $region5: #{tpu_custom_call.1} parent=1 // loop_body
      %s29 = ssub.s32 %s24, 1
      %s30 = ssub.s32 %s24, 2
      %s31 = sadd.s32 %s24, 1
      %s32 = ssub.s32 %s24, %s31
      %p33 = scmp.eq.s32.totalorder %s32, 0
      %s35 = sadd.s32 %s34, 1
      %s36 = scalar_select %p33, %s34, %s35
      %p39 = pneg %p33
      %p40 = scmp.eq.s32.totalorder %s24, 1
      %p41 = por %p39, %p40
      %p42 = scmp.ne.s32.totalorder %s34, %s37
      %p43 = scmp.eq.s32.totalorder %s24, 0
      %p44 = por %p42, %p43
      %p45 = scmp.ne.s32.totalorder %s34, %s37
      %p46 = scmp.eq.s32.totalorder %s29, 1
      %p47 = por %p45, %p46
      %p48 = scmp.ne.s32.totalorder %s37, %s38
      %p49 = scmp.eq.s32.totalorder %s29, 0
      %p50 = por %p48, %p49
      %p51 = scmp.ne.s32.totalorder %s37, %s38
      %p52 = scmp.eq.s32.totalorder %s30, 1
      %p53 = por %p51, %p52
      %p55 = scmp.ne.s32.totalorder %s38, %s54
      %p56 = scmp.eq.s32.totalorder %s30, 0
      %p57 = por %p55, %p56
      %s59 = sadd.s32 %s58, 1
      %p62 = scmp.eq.s32.totalorder %s24, 1
      %p63 = scmp.ne.s32.totalorder %s58, %s60
      %p64 = scmp.eq.s32.totalorder %s24, 0
      %p65 = por %p63, %p64
      %p66 = scmp.ne.s32.totalorder %s58, %s60
      %p67 = scmp.eq.s32.totalorder %s29, 1
      %p68 = por %p66, %p67
      %p69 = scmp.ne.s32.totalorder %s60, %s61
      %p70 = scmp.eq.s32.totalorder %s29, 0
      %p71 = por %p69, %p70
      %p72 = scmp.ne.s32.totalorder %s60, %s61
      %p73 = scmp.eq.s32.totalorder %s30, 1
      %p74 = por %p72, %p73
      %p76 = scmp.ne.s32.totalorder %s61, %s75
      %p77 = scmp.eq.s32.totalorder %s30, 0
      %p78 = por %p76, %p77
      %s80 = sadd.s32 %s79, 1
      %p83 = scmp.eq.s32.totalorder %s24, 1
      %p84 = scmp.ne.s32.totalorder %s79, %s81
      %p85 = scmp.eq.s32.totalorder %s24, 0
      %p86 = por %p84, %p85
      %p87 = scmp.ne.s32.totalorder %s79, %s81
      %p88 = scmp.eq.s32.totalorder %s29, 1
      %p89 = por %p87, %p88
      %p90 = scmp.ne.s32.totalorder %s81, %s82
      %p91 = scmp.eq.s32.totalorder %s29, 0
      %p92 = por %p90, %p91
      %p93 = scmp.ne.s32.totalorder %s81, %s82
      %p94 = scmp.eq.s32.totalorder %s30, 1
      %p95 = por %p93, %p94
      %p97 = scmp.ne.s32.totalorder %s82, %s96
      %p98 = scmp.eq.s32.totalorder %s30, 0
      %p99 = por %p97, %p98
      %s101 = sadd.s32 %s100, 1
      %p104 = scmp.eq.s32.totalorder %s24, 1
      %p105 = scmp.ne.s32.totalorder %s100, %s102
      %p106 = scmp.eq.s32.totalorder %s24, 0
      %p107 = por %p105, %p106
      %p108 = scmp.ne.s32.totalorder %s100, %s102
      %p109 = scmp.eq.s32.totalorder %s29, 1
      %p110 = por %p108, %p109
      %p111 = scmp.ne.s32.totalorder %s102, %s103
      %p112 = scmp.eq.s32.totalorder %s29, 0
      %p113 = por %p111, %p112
      %p114 = scmp.ne.s32.totalorder %s102, %s103
      %p115 = scmp.eq.s32.totalorder %s30, 1
      %p116 = por %p114, %p115
      %p118 = scmp.ne.s32.totalorder %s103, %s117
      %p119 = scmp.eq.s32.totalorder %s30, 0
      %p120 = por %p118, %p119
      %s122 = sadd.s32 %s121, 1
      %p125 = scmp.eq.s32.totalorder %s24, 1
      %p126 = scmp.ne.s32.totalorder %s121, %s123
      %p127 = scmp.eq.s32.totalorder %s24, 0
      %p128 = por %p126, %p127
      %p129 = scmp.ne.s32.totalorder %s121, %s123
      %p130 = scmp.eq.s32.totalorder %s29, 1
      %p131 = por %p129, %p130
      %p132 = scmp.ne.s32.totalorder %s123, %s124
      %p133 = scmp.eq.s32.totalorder %s29, 0
      %p134 = por %p132, %p133
      %p135 = scmp.ne.s32.totalorder %s123, %s124
      %p136 = scmp.eq.s32.totalorder %s30, 1
      %p137 = por %p135, %p136
      %p139 = scmp.ne.s32.totalorder %s124, %s138
      %p140 = scmp.eq.s32.totalorder %s30, 0
      %p141 = por %p139, %p140
      %s143 = sadd.s32 %s142, 1
      %p146 = scmp.eq.s32.totalorder %s24, 1
      %p147 = scmp.ne.s32.totalorder %s142, %s144
      %p148 = scmp.eq.s32.totalorder %s24, 0
      %p149 = por %p147, %p148
      %p150 = scmp.ne.s32.totalorder %s142, %s144
      %p151 = scmp.eq.s32.totalorder %s29, 1
      %p152 = por %p150, %p151
      %p153 = scmp.ne.s32.totalorder %s144, %s145
      %p154 = scmp.eq.s32.totalorder %s29, 0
      %p155 = por %p153, %p154
      %p156 = scmp.ne.s32.totalorder %s144, %s145
      %p157 = scmp.eq.s32.totalorder %s30, 1
      %p158 = por %p156, %p157
      %p160 = scmp.ne.s32.totalorder %s145, %s159
      %p161 = scmp.eq.s32.totalorder %s30, 0
      %p162 = por %p160, %p161
      %s164 = sadd.s32 %s163, 1
      %p167 = scmp.eq.s32.totalorder %s24, 1
      %p168 = scmp.ne.s32.totalorder %s163, %s165
      %p169 = scmp.eq.s32.totalorder %s24, 0
      %p170 = por %p168, %p169
      %p171 = scmp.ne.s32.totalorder %s163, %s165
      %p172 = scmp.eq.s32.totalorder %s29, 1
      %p173 = por %p171, %p172
      %p174 = scmp.ne.s32.totalorder %s165, %s166
      %p175 = scmp.eq.s32.totalorder %s29, 0
      %p176 = por %p174, %p175
      %p177 = scmp.ne.s32.totalorder %s165, %s166
      %p178 = scmp.eq.s32.totalorder %s30, 1
      %p179 = por %p177, %p178
      %p181 = scmp.ne.s32.totalorder %s166, %s180
      %p182 = scmp.eq.s32.totalorder %s30, 0
      %p183 = por %p181, %p182
      %s185 = sadd.s32 %s184, 1
      %p188 = scmp.eq.s32.totalorder %s24, 1
      %p189 = scmp.ne.s32.totalorder %s184, %s186
      %p190 = scmp.eq.s32.totalorder %s24, 0
      %p191 = por %p189, %p190
      %p192 = scmp.ne.s32.totalorder %s184, %s186
      %p193 = scmp.eq.s32.totalorder %s29, 1
      %p194 = por %p192, %p193
      %p195 = scmp.ne.s32.totalorder %s186, %s187
      %p196 = scmp.eq.s32.totalorder %s29, 0
      %p197 = por %p195, %p196
      %p198 = scmp.ne.s32.totalorder %s186, %s187
      %p199 = scmp.eq.s32.totalorder %s30, 1
      %p200 = por %p198, %p199
      %p202 = scmp.ne.s32.totalorder %s187, %s201
      %p203 = scmp.eq.s32.totalorder %s30, 0
      %p204 = por %p202, %p203
      %s206 = sadd.s32 %s205, 1
      %p209 = scmp.eq.s32.totalorder %s24, 1
      %p210 = scmp.ne.s32.totalorder %s205, %s207
      %p211 = scmp.eq.s32.totalorder %s24, 0
      %p212 = por %p210, %p211
      %p213 = scmp.ne.s32.totalorder %s205, %s207
      %p214 = scmp.eq.s32.totalorder %s29, 1
      %p215 = por %p213, %p214
      %p216 = scmp.ne.s32.totalorder %s207, %s208
      %p217 = scmp.eq.s32.totalorder %s29, 0
      %p218 = por %p216, %p217
      %p219 = scmp.ne.s32.totalorder %s207, %s208
      %p220 = scmp.eq.s32.totalorder %s30, 1
      %p221 = por %p219, %p220
      %p223 = scmp.ne.s32.totalorder %s208, %s222
      %p224 = scmp.eq.s32.totalorder %s30, 0
      %p225 = por %p223, %p224
      %s227 = sadd.s32 %s226, 1
      %p230 = scmp.eq.s32.totalorder %s24, 1
      %p231 = scmp.ne.s32.totalorder %s226, %s228
      %p232 = scmp.eq.s32.totalorder %s24, 0
      %p233 = por %p231, %p232
      %p234 = scmp.ne.s32.totalorder %s226, %s228
      %p235 = scmp.eq.s32.totalorder %s29, 1
      %p236 = por %p234, %p235
      %p237 = scmp.ne.s32.totalorder %s228, %s229
      %p238 = scmp.eq.s32.totalorder %s29, 0
      %p239 = por %p237, %p238
      %p240 = scmp.ne.s32.totalorder %s228, %s229
      %p241 = scmp.eq.s32.totalorder %s30, 1
      %p242 = por %p240, %p241
      %p244 = scmp.ne.s32.totalorder %s229, %s243
      %p245 = scmp.eq.s32.totalorder %s30, 0
      %p246 = por %p244, %p245
      %s247 = ssub.s32 %s24, %s31
      %p248 = scmp.eq.s32.totalorder %s247, 0
      %s250 = sadd.s32 %s249, 1
      %s251 = scalar_select %p248, %s249, %s250
      %p254 = pneg %p248
      %p255 = scmp.eq.s32.totalorder %s24, 1
      %p256 = por %p254, %p255
      %p257 = scmp.ne.s32.totalorder %s249, %s252
      %p258 = scmp.eq.s32.totalorder %s24, 0
      %p259 = por %p257, %p258
      %p260 = scmp.ne.s32.totalorder %s249, %s252
      %p261 = scmp.eq.s32.totalorder %s29, 1
      %p262 = por %p260, %p261
      %p263 = scmp.ne.s32.totalorder %s252, %s253
      %p264 = scmp.eq.s32.totalorder %s29, 0
      %p265 = por %p263, %p264
      %p266 = scmp.ne.s32.totalorder %s252, %s253
      %p267 = scmp.eq.s32.totalorder %s30, 1
      %p268 = por %p266, %p267
      %p270 = scmp.ne.s32.totalorder %s253, %s269
      %p271 = scmp.eq.s32.totalorder %s30, 0
      %p272 = por %p270, %p271
      %p273 = scmp.le.s32.totalorder 1, %s24
      %p274 = scmp.lt.s32.totalorder %s24, 3
      %p275 = pnand %p273, %p274
      %p276 = pneg %p275
      // Predicated region
      $region9: #{tpu_custom_call.1} parent=5 // pred_check
        _
      $region10: #{tpu_custom_call.1} parent=5 // pred_check_branch
        %278 = sbr.rel (%p275) target = $region12
      $region11: #{tpu_custom_call.1} parent=5 // pred_region
        %s279 = ssub.s32 %s24, 1
        // Predicated region
        $region13: #{tpu_custom_call.1} parent=11 // pred_check
          %p280 = pneg %p71
        $region14: #{tpu_custom_call.1} parent=11 // pred_check_branch
          %282 = sbr.rel (%p280) target = $region16
        $region15: #{tpu_custom_call.1} parent=11 // pred_region
          %s284 = ssub.s32 2048, 2048
          %285 = vsyncadd [#allocation7], %s284
          %s286 = sshll.u32 [#allocation6], 4
          %s287 = int_to_ptr.vmem [resolvable:$true] %s286
          %292 = dma.hbm_to_vmem [thread:$0]  %s1, 2048, %s287, [#allocation7], 128, 128, 8
        $region16: #{tpu_custom_call.1} parent=11 // pred_fallthru
          _
        // Predicated region
        $region17: #{tpu_custom_call.1} parent=11 // pred_check
          %p293 = pneg %p92
        $region18: #{tpu_custom_call.1} parent=11 // pred_check_branch
          %295 = sbr.rel (%p293) target = $region20
        $region19: #{tpu_custom_call.1} parent=11 // pred_region
          _
        $region20: #{tpu_custom_call.1} parent=11 // pred_fallthru
          _
        // Predicated region
        $region21: #{tpu_custom_call.1} parent=11 // pred_check
          %p296 = pneg %p113
        $region22: #{tpu_custom_call.1} parent=11 // pred_check_branch
          %298 = sbr.rel (%p296) target = $region24
        $region23: #{tpu_custom_call.1} parent=11 // pred_region
          _
        $region24: #{tpu_custom_call.1} parent=11 // pred_fallthru
          _
        // Predicated region
        $region25: #{tpu_custom_call.1} parent=11 // pred_check
          %p299 = pneg %p134
        $region26: #{tpu_custom_call.1} parent=11 // pred_check_branch
          %301 = sbr.rel (%p299) target = $region28
        $region27: #{tpu_custom_call.1} parent=11 // pred_region
          %s303 = ssub.s32 256, 256
          %304 = vsyncadd [#allocation7], %s303
          %s305 = sshll.u32 [#allocation8], 4
          %s306 = int_to_ptr.vmem [resolvable:$true] %s305
          %311 = dma.hbm_to_vmem [thread:$0]  %s4, 256, %s306, [#allocation7], 128, 128, 8
        $region28: #{tpu_custom_call.1} parent=11 // pred_fallthru
          _
        // Predicated region
        $region29: #{tpu_custom_call.1} parent=11 // pred_check
          %p312 = pneg %p155
        $region30: #{tpu_custom_call.1} parent=11 // pred_check_branch
          %314 = sbr.rel (%p312) target = $region32
        $region31: #{tpu_custom_call.1} parent=11 // pred_region
          _
        $region32: #{tpu_custom_call.1} parent=11 // pred_fallthru
          _
        // Predicated region
        $region33: #{tpu_custom_call.1} parent=11 // pred_check
          %p315 = pneg %p176
        $region34: #{tpu_custom_call.1} parent=11 // pred_check_branch
          %317 = sbr.rel (%p315) target = $region36
        $region35: #{tpu_custom_call.1} parent=11 // pred_region
          _
        $region36: #{tpu_custom_call.1} parent=11 // pred_fallthru
          _
        // Predicated region
        $region37: #{tpu_custom_call.1} parent=11 // pred_check
          %p318 = pneg %p197
        $region38: #{tpu_custom_call.1} parent=11 // pred_check_branch
          %320 = sbr.rel (%p318) target = $region40
        $region39: #{tpu_custom_call.1} parent=11 // pred_region
          %s322 = ssub.s32 2048, 2048
          %323 = vsyncadd [#allocation10], %s322
          %s324 = sshll.u32 [#allocation9], 4
          %s325 = int_to_ptr.vmem [resolvable:$true] %s324
          %330 = dma.hbm_to_vmem [thread:$0]  %s7, 2048, %s325, [#allocation10], 128, 128, 8
        $region40: #{tpu_custom_call.1} parent=11 // pred_fallthru
          _
        // Predicated region
        $region41: #{tpu_custom_call.1} parent=11 // pred_check
          %p331 = pneg %p218
        $region42: #{tpu_custom_call.1} parent=11 // pred_check_branch
          %333 = sbr.rel (%p331) target = $region44
        $region43: #{tpu_custom_call.1} parent=11 // pred_region
          _
        $region44: #{tpu_custom_call.1} parent=11 // pred_fallthru
          _
        // Predicated region
        $region45: #{tpu_custom_call.1} parent=11 // pred_check
          %p334 = pneg %p239
        $region46: #{tpu_custom_call.1} parent=11 // pred_check_branch
          %336 = sbr.rel (%p334) target = $region48
        $region47: #{tpu_custom_call.1} parent=11 // pred_region
          _
        $region48: #{tpu_custom_call.1} parent=11 // pred_fallthru
          _
      $region12: #{tpu_custom_call.1} parent=5 // pred_fallthru
        _
      %p337 = scmp.lt.s32.totalorder %s24, 2
      // Predicated region
      $region49: #{tpu_custom_call.1} parent=5 // pred_check
        %p338 = pneg %p337
      $region50: #{tpu_custom_call.1} parent=5 // pred_check_branch
        %340 = sbr.rel (%p338) target = $region52
      $region51: #{tpu_custom_call.1} parent=5 // pred_region
        // Predicated region
        $region53: #{tpu_custom_call.1} parent=51 // pred_check
          %p341 = pneg %p44
        $region54: #{tpu_custom_call.1} parent=51 // pred_check_branch
          %343 = sbr.rel (%p341) target = $region56
        $region55: #{tpu_custom_call.1} parent=51 // pred_region
          %s344 = sand.u32 %s34, 1
          %s345 = scalar_lea.sflag [#allocation4], %s344
          %s346 = sand.u32 %s34, 1
          %s347 = smul.addr %s346, 256
          %s348 = scalar_lea.vmem [#allocation3], %s347
          %s350 = ssub.s32 4096, 4096
          %351 = vsyncadd %s345, %s350
          %s352 = smul.addr %s24, 32
          %s353 = smul.addr %s352, 128
          %s354 = scalar_lea.hbm %s0, %s353
          %s355 = sshll.u32 %s348, 4
          %s356 = int_to_ptr.vmem [resolvable:$true] %s355
          %361 = dma.hbm_to_vmem [thread:$0]  %s354, 4096, %s356, %s345, 128, 128, 8
        $region56: #{tpu_custom_call.1} parent=51 // pred_fallthru
          _
      $region52: #{tpu_custom_call.1} parent=5 // pred_fallthru
        _
      %p362 = scmp.le.s32.totalorder 1, %s24
      %p363 = scmp.lt.s32.totalorder %s24, 3
      %p364 = pnand %p362, %p363
      %p365 = pneg %p364
      // Predicated region
      $region57: #{tpu_custom_call.1} parent=5 // pred_check
        _
      $region58: #{tpu_custom_call.1} parent=5 // pred_check_branch
        %367 = sbr.rel (%p364) target = $region60
      $region59: #{tpu_custom_call.1} parent=5 // pred_region
        %s368 = ssub.s32 %s24, 1
        %s369 = sand.u32 %s37, 1
        %s370 = scalar_lea.sflag [#allocation4], %s369
        %s371 = sand.u32 %s37, 1
        %s372 = smul.addr %s371, 256
        %s373 = scalar_lea.vmem [#allocation3], %s372
        // Predicated region
        $region61: #{tpu_custom_call.1} parent=59 // pred_check
          %p374 = pneg %p50
        $region62: #{tpu_custom_call.1} parent=59 // pred_check_branch
          %376 = sbr.rel (%p374) target = $region64
        $region63: #{tpu_custom_call.1} parent=59 // pred_region
          %377 = dma.done %s370, 4096
        $region64: #{tpu_custom_call.1} parent=59 // pred_fallthru
          _
        // Predicated region
        $region65: #{tpu_custom_call.1} parent=59 // pred_check
          %p378 = pneg %p71
        $region66: #{tpu_custom_call.1} parent=59 // pred_check_branch
          %380 = sbr.rel (%p378) target = $region68
        $region67: #{tpu_custom_call.1} parent=59 // pred_region
          %381 = dma.done [#allocation7], 2048
        $region68: #{tpu_custom_call.1} parent=59 // pred_fallthru
          _
        // Predicated region
        $region69: #{tpu_custom_call.1} parent=59 // pred_check
          %p382 = pneg %p134
        $region70: #{tpu_custom_call.1} parent=59 // pred_check_branch
          %384 = sbr.rel (%p382) target = $region72
        $region71: #{tpu_custom_call.1} parent=59 // pred_region
          %385 = dma.done [#allocation7], 256
        $region72: #{tpu_custom_call.1} parent=59 // pred_fallthru
          _
        // Predicated region
        $region73: #{tpu_custom_call.1} parent=59 // pred_check
          %p386 = pneg %p197
        $region74: #{tpu_custom_call.1} parent=59 // pred_check_branch
          %388 = sbr.rel (%p386) target = $region76
        $region75: #{tpu_custom_call.1} parent=59 // pred_region
          %389 = dma.done [#allocation10], 2048
        $region76: #{tpu_custom_call.1} parent=59 // pred_fallthru
          _
        %s390 = sand.u32 %s37, 1
        %s391 = scalar_lea.sflag [#allocation4], %s390
        %s392 = sand.u32 %s37, 1
        %s393 = smul.addr %s392, 256
        %s394 = scalar_lea.vmem [#allocation3], %s393
        %p395 = pneg %p50
        %p396 = pneg %p47
        %p397 = pneg %p71
        %p398 = pneg %p68
        %p399 = pneg %p92
        %p400 = pneg %p89
        %p401 = pneg %p113
        %p402 = pneg %p110
        %p403 = pneg %p134
        %p404 = pneg %p131
        %p405 = pneg %p155
        %p406 = pneg %p152
        %p407 = pneg %p176
        %p408 = pneg %p173
        %p409 = pneg %p197
        %p410 = pneg %p194
        %p411 = pneg %p218
        %p412 = pneg %p215
        %p413 = pneg %p239
        %p414 = pneg %p236
        %p415 = pneg %p265
        %p416 = pneg %p262
        %s417 = sand.u32 %s252, 1
        %s418 = scalar_lea.sflag [#allocation5], %s417
        %s419 = sand.u32 %s252, 1
        %s420 = smul.addr %s419, 256
        %s421 = scalar_lea.vmem [#allocation11], %s420
        %v422 = vld [vmem:[%s373] sm:$0xff]
        %v423 = vld [vmem:[%s373 + $0x8] sm:$0xff]
        %v424 = vld [vmem:[%s373 + $0x10] sm:$0xff]
        %v425 = vld [vmem:[%s373 + $0x18] sm:$0xff]
        %v426 = vld [vmem:[%s373 + $0x20] sm:$0xff]
        %v427 = vld [vmem:[%s373 + $0x28] sm:$0xff]
        %v428 = vld [vmem:[%s373 + $0x30] sm:$0xff]
        %v429 = vld [vmem:[%s373 + $0x38] sm:$0xff]
        %v430 = vld [vmem:[%s373 + $0x40] sm:$0xff]
        %v431 = vld [vmem:[%s373 + $0x48] sm:$0xff]
        %v432 = vld [vmem:[%s373 + $0x50] sm:$0xff]
        %v433 = vld [vmem:[%s373 + $0x58] sm:$0xff]
        %v434 = vld [vmem:[%s373 + $0x60] sm:$0xff]
        %v435 = vld [vmem:[%s373 + $0x68] sm:$0xff]
        %v436 = vld [vmem:[%s373 + $0x70] sm:$0xff]
        %v437 = vld [vmem:[%s373 + $0x78] sm:$0xff]
        %v438 = vld [vmem:[%s373 + $0x80] sm:$0xff]
        %v439 = vld [vmem:[%s373 + $0x88] sm:$0xff]
        %v440 = vld [vmem:[%s373 + $0x90] sm:$0xff]
        %v441 = vld [vmem:[%s373 + $0x98] sm:$0xff]
        %v442 = vld [vmem:[%s373 + $0xa0] sm:$0xff]
        %v443 = vld [vmem:[%s373 + $0xa8] sm:$0xff]
        %v444 = vld [vmem:[%s373 + $0xb0] sm:$0xff]
        %v445 = vld [vmem:[%s373 + $0xb8] sm:$0xff]
        %v446 = vld [vmem:[%s373 + $0xc0] sm:$0xff]
        %v447 = vld [vmem:[%s373 + $0xc8] sm:$0xff]
        %v448 = vld [vmem:[%s373 + $0xd0] sm:$0xff]
        %v449 = vld [vmem:[%s373 + $0xd8] sm:$0xff]
        %v450 = vld [vmem:[%s373 + $0xe0] sm:$0xff]
        %v451 = vld [vmem:[%s373 + $0xe8] sm:$0xff]
        %v452 = vld [vmem:[%s373 + $0xf0] sm:$0xff]
        %v453 = vld [vmem:[%s373 + $0xf8] sm:$0xff]
        %v454 = vld [vmem:[#allocation6] sm:$0xff]
        %v455 = vld [vmem:[#allocation6 + $0x8] sm:$0xff]
        %v456 = vld [vmem:[#allocation6 + $0x10] sm:$0xff]
        %v457 = vld [vmem:[#allocation6 + $0x18] sm:$0xff]
        %v458 = vld [vmem:[#allocation6 + $0x20] sm:$0xff]
        %v459 = vld [vmem:[#allocation6 + $0x28] sm:$0xff]
        %v460 = vld [vmem:[#allocation6 + $0x30] sm:$0xff]
        %v461 = vld [vmem:[#allocation6 + $0x38] sm:$0xff]
        %v462 = vld [vmem:[#allocation6 + $0x40] sm:$0xff]
        %v463 = vld [vmem:[#allocation6 + $0x48] sm:$0xff]
        %v464 = vld [vmem:[#allocation6 + $0x50] sm:$0xff]
        %v465 = vld [vmem:[#allocation6 + $0x58] sm:$0xff]
        %v466 = vld [vmem:[#allocation6 + $0x60] sm:$0xff]
        %v467 = vld [vmem:[#allocation6 + $0x68] sm:$0xff]
        %v468 = vld [vmem:[#allocation6 + $0x70] sm:$0xff]
        %v469 = vld [vmem:[#allocation6 + $0x78] sm:$0xff]
        %470 = vmatprep.subr.mxu0 0.0
        %471 = vmatpush1.msra.mxu0 %v469
        %472 = vmatprep.subr.mxu0 0.0
        %473 = vmatpush1.msra.mxu0 %v468
        %474 = vmatprep.subr.mxu0 0.0
        %475 = vmatpush1.msra.mxu0 %v467
        %476 = vmatprep.subr.mxu0 0.0
        %477 = vmatpush1.msra.mxu0 %v466
        %478 = vmatprep.subr.mxu0 0.0
        %479 = vmatpush1.msra.mxu0 %v465
        %480 = vmatprep.subr.mxu0 0.0
        %481 = vmatpush1.msra.mxu0 %v464
        %482 = vmatprep.subr.mxu0 0.0
        %483 = vmatpush1.msra.mxu0 %v463
        %484 = vmatprep.subr.mxu0 0.0
        %485 = vmatpush1.msra.mxu0 %v462
        %486 = vmatprep.subr.mxu0 0.0
        %487 = vmatpush1.msra.mxu0 %v461
        %488 = vmatprep.subr.mxu0 0.0
        %489 = vmatpush1.msra.mxu0 %v460
        %490 = vmatprep.subr.mxu0 0.0
        %491 = vmatpush1.msra.mxu0 %v459
        %492 = vmatprep.subr.mxu0 0.0
        %493 = vmatpush1.msra.mxu0 %v458
        %494 = vmatprep.subr.mxu0 0.0
        %495 = vmatpush1.msra.mxu0 %v457
        %496 = vmatprep.subr.mxu0 0.0
        %497 = vmatpush1.msra.mxu0 %v456
        %498 = vmatprep.subr.mxu0 0.0
        %499 = vmatpush1.msra.mxu0 %v455
        %500 = vmatprep.subr.mxu0 0.0
        %501 = vmatpush1.msra.mxu0 %v454
        %502 = vmatprep.subr.mxu0 0.0
        %503 = vmatpush2.msra.mxu0 0.0
        %504 = vmatprep.subr.mxu0 0.0
        %505 = vmatpush2.msra.mxu0 0.0
        %506 = vmatprep.subr.mxu0 0.0
        %507 = vmatpush2.msra.mxu0 0.0
        %508 = vmatprep.subr.mxu0 0.0
        %509 = vmatpush2.msra.mxu0 0.0
        %510 = vmatprep.subr.mxu0 0.0
        %511 = vmatpush2.msra.mxu0 0.0
        %512 = vmatprep.subr.mxu0 0.0
        %513 = vmatpush2.msra.mxu0 0.0
        %514 = vmatprep.subr.mxu0 0.0
        %515 = vmatpush2.msra.mxu0 0.0
        %516 = vmatprep.subr.mxu0 0.0
        %517 = vmatpush2.msra.mxu0 0.0
        %518 = vmatprep.subr.mxu0 0.0
        %519 = vmatpush2.msra.mxu0 0.0
        %520 = vmatprep.subr.mxu0 0.0
        %521 = vmatpush2.msra.mxu0 0.0
        %522 = vmatprep.subr.mxu0 0.0
        %523 = vmatpush2.msra.mxu0 0.0
        %524 = vmatprep.subr.mxu0 0.0
        %525 = vmatpush2.msra.mxu0 0.0
        %526 = vmatprep.subr.mxu0 0.0
        %527 = vmatpush2.msra.mxu0 0.0
        %528 = vmatprep.subr.mxu0 0.0
        %529 = vmatpush2.msra.mxu0 0.0
        %530 = vmatprep.subr.mxu0 0.0
        %531 = vmatpush2.msra.mxu0 0.0
        %532 = vmatprep.subr.mxu0 0.0
        %533 = vmatpush2.msra.mxu0 0.0
        %534 = vmatprep.mubr.f32.mxu0 0.0
        %535 = vmatmul.mubr.f32.gmra.mxu0 %v422
        %v536 = vpop.f32.mrf.mxu0
        %v537 = vadd.f32 0.0, %v536
        %v538 = vpop.f32.mrf.mxu0
        %539 = vmatprep.mubr.f32.mxu0 0.0
        %540 = vmatmul.mubr.f32.gmra.mxu0 %v423
        %v541 = vpop.f32.mrf.mxu0
        %v542 = vadd.f32 0.0, %v541
        %v543 = vpop.f32.mrf.mxu0
        %544 = vmatprep.mubr.f32.mxu0 0.0
        %545 = vmatmul.mubr.f32.gmra.mxu0 %v424
        %v546 = vpop.f32.mrf.mxu0
        %v547 = vadd.f32 0.0, %v546
        %v548 = vpop.f32.mrf.mxu0
        %549 = vmatprep.mubr.f32.mxu0 0.0
        %550 = vmatmul.mubr.f32.gmra.mxu0 %v425
        %v551 = vpop.f32.mrf.mxu0
        %v552 = vadd.f32 0.0, %v551
        %v553 = vpop.f32.mrf.mxu0
        %554 = vmatprep.mubr.f32.mxu0 0.0
        %555 = vmatmul.mubr.f32.gmra.mxu0 %v426
        %v556 = vpop.f32.mrf.mxu0
        %v557 = vadd.f32 0.0, %v556
        %v558 = vpop.f32.mrf.mxu0
        %559 = vmatprep.mubr.f32.mxu0 0.0
        %560 = vmatmul.mubr.f32.gmra.mxu0 %v427
        %v561 = vpop.f32.mrf.mxu0
        %v562 = vadd.f32 0.0, %v561
        %v563 = vpop.f32.mrf.mxu0
        %564 = vmatprep.mubr.f32.mxu0 0.0
        %565 = vmatmul.mubr.f32.gmra.mxu0 %v428
        %v566 = vpop.f32.mrf.mxu0
        %v567 = vadd.f32 0.0, %v566
        %v568 = vpop.f32.mrf.mxu0
        %569 = vmatprep.mubr.f32.mxu0 0.0
        %570 = vmatmul.mubr.f32.gmra.mxu0 %v429
        %v571 = vpop.f32.mrf.mxu0
        %v572 = vadd.f32 0.0, %v571
        %v573 = vpop.f32.mrf.mxu0
        %574 = vmatprep.mubr.f32.mxu0 0.0
        %575 = vmatmul.mubr.f32.gmra.mxu0 %v430
        %v576 = vpop.f32.mrf.mxu0
        %v577 = vadd.f32 0.0, %v576
        %v578 = vpop.f32.mrf.mxu0
        %579 = vmatprep.mubr.f32.mxu0 0.0
        %580 = vmatmul.mubr.f32.gmra.mxu0 %v431
        %v581 = vpop.f32.mrf.mxu0
        %v582 = vadd.f32 0.0, %v581
        %v583 = vpop.f32.mrf.mxu0
        %584 = vmatprep.mubr.f32.mxu0 0.0
        %585 = vmatmul.mubr.f32.gmra.mxu0 %v432
        %v586 = vpop.f32.mrf.mxu0
        %v587 = vadd.f32 0.0, %v586
        %v588 = vpop.f32.mrf.mxu0
        %589 = vmatprep.mubr.f32.mxu0 0.0
        %590 = vmatmul.mubr.f32.gmra.mxu0 %v433
        %v591 = vpop.f32.mrf.mxu0
        %v592 = vadd.f32 0.0, %v591
        %v593 = vpop.f32.mrf.mxu0
        %594 = vmatprep.mubr.f32.mxu0 0.0
        %595 = vmatmul.mubr.f32.gmra.mxu0 %v434
        %v596 = vpop.f32.mrf.mxu0
        %v597 = vadd.f32 0.0, %v596
        %v598 = vpop.f32.mrf.mxu0
        %599 = vmatprep.mubr.f32.mxu0 0.0
        %600 = vmatmul.mubr.f32.gmra.mxu0 %v435
        %v601 = vpop.f32.mrf.mxu0
        %v602 = vadd.f32 0.0, %v601
        %v603 = vpop.f32.mrf.mxu0
        %604 = vmatprep.mubr.f32.mxu0 0.0
        %605 = vmatmul.mubr.f32.gmra.mxu0 %v436
        %v606 = vpop.f32.mrf.mxu0
        %v607 = vadd.f32 0.0, %v606
        %v608 = vpop.f32.mrf.mxu0
        %609 = vmatprep.mubr.f32.mxu0 0.0
        %610 = vmatmul.mubr.f32.gmra.mxu0 %v437
        %v611 = vpop.f32.mrf.mxu0
        %v612 = vadd.f32 0.0, %v611
        %v613 = vpop.f32.mrf.mxu0
        %614 = vmatprep.mubr.f32.mxu0 0.0
        %615 = vmatmul.mubr.f32.gmra.mxu0 %v438
        %v616 = vpop.f32.mrf.mxu0
        %v617 = vadd.f32 0.0, %v616
        %v618 = vpop.f32.mrf.mxu0
        %619 = vmatprep.mubr.f32.mxu0 0.0
        %620 = vmatmul.mubr.f32.gmra.mxu0 %v439
        %v621 = vpop.f32.mrf.mxu0
        %v622 = vadd.f32 0.0, %v621
        %v623 = vpop.f32.mrf.mxu0
        %624 = vmatprep.mubr.f32.mxu0 0.0
        %625 = vmatmul.mubr.f32.gmra.mxu0 %v440
        %v626 = vpop.f32.mrf.mxu0
        %v627 = vadd.f32 0.0, %v626
        %v628 = vpop.f32.mrf.mxu0
        %629 = vmatprep.mubr.f32.mxu0 0.0
        %630 = vmatmul.mubr.f32.gmra.mxu0 %v441
        %v631 = vpop.f32.mrf.mxu0
        %v632 = vadd.f32 0.0, %v631
        %v633 = vpop.f32.mrf.mxu0
        %634 = vmatprep.mubr.f32.mxu0 0.0
        %635 = vmatmul.mubr.f32.gmra.mxu0 %v442
        %v636 = vpop.f32.mrf.mxu0
        %v637 = vadd.f32 0.0, %v636
        %v638 = vpop.f32.mrf.mxu0
        %639 = vmatprep.mubr.f32.mxu0 0.0
        %640 = vmatmul.mubr.f32.gmra.mxu0 %v443
        %v641 = vpop.f32.mrf.mxu0
        %v642 = vadd.f32 0.0, %v641
        %v643 = vpop.f32.mrf.mxu0
        %644 = vmatprep.mubr.f32.mxu0 0.0
        %645 = vmatmul.mubr.f32.gmra.mxu0 %v444
        %v646 = vpop.f32.mrf.mxu0
        %v647 = vadd.f32 0.0, %v646
        %v648 = vpop.f32.mrf.mxu0
        %649 = vmatprep.mubr.f32.mxu0 0.0
        %650 = vmatmul.mubr.f32.gmra.mxu0 %v445
        %v651 = vpop.f32.mrf.mxu0
        %v652 = vadd.f32 0.0, %v651
        %v653 = vpop.f32.mrf.mxu0
        %654 = vmatprep.mubr.f32.mxu0 0.0
        %655 = vmatmul.mubr.f32.gmra.mxu0 %v446
        %v656 = vpop.f32.mrf.mxu0
        %v657 = vadd.f32 0.0, %v656
        %v658 = vpop.f32.mrf.mxu0
        %659 = vmatprep.mubr.f32.mxu0 0.0
        %660 = vmatmul.mubr.f32.gmra.mxu0 %v447
        %v661 = vpop.f32.mrf.mxu0
        %v662 = vadd.f32 0.0, %v661
        %v663 = vpop.f32.mrf.mxu0
        %664 = vmatprep.mubr.f32.mxu0 0.0
        %665 = vmatmul.mubr.f32.gmra.mxu0 %v448
        %v666 = vpop.f32.mrf.mxu0
        %v667 = vadd.f32 0.0, %v666
        %v668 = vpop.f32.mrf.mxu0
        %669 = vmatprep.mubr.f32.mxu0 0.0
        %670 = vmatmul.mubr.f32.gmra.mxu0 %v449
        %v671 = vpop.f32.mrf.mxu0
        %v672 = vadd.f32 0.0, %v671
        %v673 = vpop.f32.mrf.mxu0
        %674 = vmatprep.mubr.f32.mxu0 0.0
        %675 = vmatmul.mubr.f32.gmra.mxu0 %v450
        %v676 = vpop.f32.mrf.mxu0
        %v677 = vadd.f32 0.0, %v676
        %v678 = vpop.f32.mrf.mxu0
        %679 = vmatprep.mubr.f32.mxu0 0.0
        %680 = vmatmul.mubr.f32.gmra.mxu0 %v451
        %v681 = vpop.f32.mrf.mxu0
        %v682 = vadd.f32 0.0, %v681
        %v683 = vpop.f32.mrf.mxu0
        %684 = vmatprep.mubr.f32.mxu0 0.0
        %685 = vmatmul.mubr.f32.gmra.mxu0 %v452
        %v686 = vpop.f32.mrf.mxu0
        %v687 = vadd.f32 0.0, %v686
        %v688 = vpop.f32.mrf.mxu0
        %689 = vmatprep.mubr.f32.mxu0 0.0
        %690 = vmatmul.mubr.f32.gmra.mxu0 %v453
        %v691 = vpop.f32.mrf.mxu0
        %v692 = vadd.f32 0.0, %v691
        %v693 = vpop.f32.mrf.mxu0
        %694 = vdwg.mxu0
        %v695 = vld [vmem:[%s2] sm:$0x1]
        %v697 = vlaneseq
        %v698 = vshrl.u32 %v697, 7
        %v699 = vsub.s32 0, %v698
        %v700 = vrot.slane %v695, %v699
        %v702 = vmul.f32 %v537, %v700
        %v703 = vmul.f32 %v542, %v700
        %v704 = vmul.f32 %v547, %v700
        %v705 = vmul.f32 %v552, %v700
        %v706 = vmul.f32 %v557, %v700
        %v707 = vmul.f32 %v562, %v700
        %v708 = vmul.f32 %v567, %v700
        %v709 = vmul.f32 %v572, %v700
        %v710 = vmul.f32 %v577, %v700
        %v711 = vmul.f32 %v582, %v700
        %v712 = vmul.f32 %v587, %v700
        %v713 = vmul.f32 %v592, %v700
        %v714 = vmul.f32 %v597, %v700
        %v715 = vmul.f32 %v602, %v700
        %v716 = vmul.f32 %v607, %v700
        %v717 = vmul.f32 %v612, %v700
        %v718 = vmul.f32 %v617, %v700
        %v719 = vmul.f32 %v622, %v700
        %v720 = vmul.f32 %v627, %v700
        %v721 = vmul.f32 %v632, %v700
        %v722 = vmul.f32 %v637, %v700
        %v723 = vmul.f32 %v642, %v700
        %v724 = vmul.f32 %v647, %v700
        %v725 = vmul.f32 %v652, %v700
        %v726 = vmul.f32 %v657, %v700
        %v727 = vmul.f32 %v662, %v700
        %v728 = vmul.f32 %v667, %v700
        %v729 = vmul.f32 %v672, %v700
        %v730 = vmul.f32 %v677, %v700
        %v731 = vmul.f32 %v682, %v700
        %v732 = vmul.f32 %v687, %v700
        %v733 = vmul.f32 %v692, %v700
        %v734 = vld [vmem:[%s3] sm:$0x1]
        %v736 = vlaneseq
        %v737 = vshrl.u32 %v736, 7
        %v738 = vsub.s32 0, %v737
        %v739 = vrot.slane %v734, %v738
        %v741 = vadd.f32 %v702, %v739
        %v742 = vadd.f32 %v703, %v739
        %v743 = vadd.f32 %v704, %v739
        %v744 = vadd.f32 %v705, %v739
        %v745 = vadd.f32 %v706, %v739
        %v746 = vadd.f32 %v707, %v739
        %v747 = vadd.f32 %v708, %v739
        %v748 = vadd.f32 %v709, %v739
        %v749 = vadd.f32 %v710, %v739
        %v750 = vadd.f32 %v711, %v739
        %v751 = vadd.f32 %v712, %v739
        %v752 = vadd.f32 %v713, %v739
        %v753 = vadd.f32 %v714, %v739
        %v754 = vadd.f32 %v715, %v739
        %v755 = vadd.f32 %v716, %v739
        %v756 = vadd.f32 %v717, %v739
        %v757 = vadd.f32 %v718, %v739
        %v758 = vadd.f32 %v719, %v739
        %v759 = vadd.f32 %v720, %v739
        %v760 = vadd.f32 %v721, %v739
        %v761 = vadd.f32 %v722, %v739
        %v762 = vadd.f32 %v723, %v739
        %v763 = vadd.f32 %v724, %v739
        %v764 = vadd.f32 %v725, %v739
        %v765 = vadd.f32 %v726, %v739
        %v766 = vadd.f32 %v727, %v739
        %v767 = vadd.f32 %v728, %v739
        %v768 = vadd.f32 %v729, %v739
        %v769 = vadd.f32 %v730, %v739
        %v770 = vadd.f32 %v731, %v739
        %v771 = vadd.f32 %v732, %v739
        %v772 = vadd.f32 %v733, %v739
        %v773 = vmax.f32 %v741, 0.0
        %v774 = vmax.f32 %v742, 0.0
        %v775 = vmax.f32 %v743, 0.0
        %v776 = vmax.f32 %v744, 0.0
        %v777 = vmax.f32 %v745, 0.0
        %v778 = vmax.f32 %v746, 0.0
        %v779 = vmax.f32 %v747, 0.0
        %v780 = vmax.f32 %v748, 0.0
        %v781 = vmax.f32 %v749, 0.0
        %v782 = vmax.f32 %v750, 0.0
        %v783 = vmax.f32 %v751, 0.0
        %v784 = vmax.f32 %v752, 0.0
        %v785 = vmax.f32 %v753, 0.0
        %v786 = vmax.f32 %v754, 0.0
        %v787 = vmax.f32 %v755, 0.0
        %v788 = vmax.f32 %v756, 0.0
        %v789 = vmax.f32 %v757, 0.0
        %v790 = vmax.f32 %v758, 0.0
        %v791 = vmax.f32 %v759, 0.0
        %v792 = vmax.f32 %v760, 0.0
        %v793 = vmax.f32 %v761, 0.0
        %v794 = vmax.f32 %v762, 0.0
        %v795 = vmax.f32 %v763, 0.0
        %v796 = vmax.f32 %v764, 0.0
        %v797 = vmax.f32 %v765, 0.0
        %v798 = vmax.f32 %v766, 0.0
        %v799 = vmax.f32 %v767, 0.0
        %v800 = vmax.f32 %v768, 0.0
        %v801 = vmax.f32 %v769, 0.0
        %v802 = vmax.f32 %v770, 0.0
        %v803 = vmax.f32 %v771, 0.0
        %v804 = vmax.f32 %v772, 0.0
        %v805 = vmin.f32 %v773, 6.0
        %v806 = vmin.f32 %v774, 6.0
        %v807 = vmin.f32 %v775, 6.0
        %v808 = vmin.f32 %v776, 6.0
        %v809 = vmin.f32 %v777, 6.0
        %v810 = vmin.f32 %v778, 6.0
        %v811 = vmin.f32 %v779, 6.0
        %v812 = vmin.f32 %v780, 6.0
        %v813 = vmin.f32 %v781, 6.0
        %v814 = vmin.f32 %v782, 6.0
        %v815 = vmin.f32 %v783, 6.0
        %v816 = vmin.f32 %v784, 6.0
        %v817 = vmin.f32 %v785, 6.0
        %v818 = vmin.f32 %v786, 6.0
        %v819 = vmin.f32 %v787, 6.0
        %v820 = vmin.f32 %v788, 6.0
        %v821 = vmin.f32 %v789, 6.0
        %v822 = vmin.f32 %v790, 6.0
        %v823 = vmin.f32 %v791, 6.0
        %v824 = vmin.f32 %v792, 6.0
        %v825 = vmin.f32 %v793, 6.0
        %v826 = vmin.f32 %v794, 6.0
        %v827 = vmin.f32 %v795, 6.0
        %v828 = vmin.f32 %v796, 6.0
        %v829 = vmin.f32 %v797, 6.0
        %v830 = vmin.f32 %v798, 6.0
        %v831 = vmin.f32 %v799, 6.0
        %v832 = vmin.f32 %v800, 6.0
        %v833 = vmin.f32 %v801, 6.0
        %v834 = vmin.f32 %v802, 6.0
        %v835 = vmin.f32 %v803, 6.0
        %v836 = vmin.f32 %v804, 6.0
        %837 = vst [vmem:[#allocation2] sm:$0xff] 0.0
        %838 = vst [vmem:[#allocation2 + $0x8] sm:$0xff] 0.0
        %839 = vst [vmem:[#allocation2 + $0x10] sm:$0x3] 0.0
        %840 = vst [vmem:[#allocation2 + $0x18] sm:$0xff] 0.0
        %841 = vst [vmem:[#allocation2 + $0x20] sm:$0xff] 0.0
        %842 = vst [vmem:[#allocation2 + $0x28] sm:$0x3] 0.0
        %843 = vst [vmem:[#allocation2 + $0x30] sm:$0xff] 0.0
        %844 = vst [vmem:[#allocation2 + $0x38] sm:$0xff] 0.0
        %845 = vst [vmem:[#allocation2 + $0x40] sm:$0x3] 0.0
        %846 = vst [vmem:[#allocation2 + $0x48] sm:$0xff] 0.0
        %847 = vst [vmem:[#allocation2 + $0x50] sm:$0xff] 0.0
        %848 = vst [vmem:[#allocation2 + $0x58] sm:$0x3] 0.0
        %849 = vst [vmem:[#allocation2 + $0x60] sm:$0xff] 0.0
        %850 = vst [vmem:[#allocation2 + $0x68] sm:$0xff] 0.0
        %851 = vst [vmem:[#allocation2 + $0x70] sm:$0x3] 0.0
        %852 = vst [vmem:[#allocation2 + $0x78] sm:$0xff] 0.0
        %853 = vst [vmem:[#allocation2 + $0x80] sm:$0xff] 0.0
        %854 = vst [vmem:[#allocation2 + $0x88] sm:$0x3] 0.0
        %855 = vst [vmem:[#allocation2 + $0x90] sm:$0xff] 0.0
        %856 = vst [vmem:[#allocation2 + $0x98] sm:$0xff] 0.0
        %857 = vst [vmem:[#allocation2 + $0xa0] sm:$0x3] 0.0
        %858 = vst [vmem:[#allocation2 + $0xa8] sm:$0xff] 0.0
        %859 = vst [vmem:[#allocation2 + $0xb0] sm:$0xff] 0.0
        %860 = vst [vmem:[#allocation2 + $0xb8] sm:$0x3] 0.0
        %861 = vst [vmem:[#allocation2 + $0xc0] sm:$0xff] 0.0
        %862 = vst [vmem:[#allocation2 + $0xc8] sm:$0xff] 0.0
        %863 = vst [vmem:[#allocation2 + $0xd0] sm:$0x3] 0.0
        %864 = vst [vmem:[#allocation2 + $0xd8] sm:$0xff] 0.0
        %865 = vst [vmem:[#allocation2 + $0xe0] sm:$0xff] 0.0
        %866 = vst [vmem:[#allocation2 + $0xe8] sm:$0x3] 0.0
        %867 = vst [vmem:[#allocation2 + $0xf0] sm:$0xff] 0.0
        %868 = vst [vmem:[#allocation2 + $0xf8] sm:$0xff] 0.0
        %869 = vst [vmem:[#allocation2 + $0x100] sm:$0x3] 0.0
        %870 = vst [vmem:[#allocation2 + $0x108] sm:$0xff] 0.0
        %871 = vst [vmem:[#allocation2 + $0x110] sm:$0xff] 0.0
        %872 = vst [vmem:[#allocation2 + $0x118] sm:$0x3] 0.0
        %873 = vst [vmem:[#allocation2 + $0x120] sm:$0xff] 0.0
        %874 = vst [vmem:[#allocation2 + $0x128] sm:$0xff] 0.0
        %875 = vst [vmem:[#allocation2 + $0x130] sm:$0x3] 0.0
        %876 = vst [vmem:[#allocation2 + $0x138] sm:$0xff] 0.0
        %877 = vst [vmem:[#allocation2 + $0x140] sm:$0xff] 0.0
        %878 = vst [vmem:[#allocation2 + $0x148] sm:$0x3] 0.0
        %879 = vst [vmem:[#allocation2 + $0x150] sm:$0xff] 0.0
        %880 = vst [vmem:[#allocation2 + $0x158] sm:$0xff] 0.0
        %881 = vst [vmem:[#allocation2 + $0x160] sm:$0x3] 0.0
        %882 = vst [vmem:[#allocation2 + $0x168] sm:$0xff] 0.0
        %883 = vst [vmem:[#allocation2 + $0x170] sm:$0xff] 0.0
        %884 = vst [vmem:[#allocation2 + $0x178] sm:$0x3] 0.0
        %885 = vst [vmem:[#allocation2 + $0x180] sm:$0xff] 0.0
        %886 = vst [vmem:[#allocation2 + $0x188] sm:$0xff] 0.0
        %887 = vst [vmem:[#allocation2 + $0x190] sm:$0x3] 0.0
        %888 = vst [vmem:[#allocation2 + $0x198] sm:$0xff] 0.0
        %889 = vst [vmem:[#allocation2 + $0x1a0] sm:$0xff] 0.0
        %890 = vst [vmem:[#allocation2 + $0x1a8] sm:$0x3] 0.0
        %s891 = scalar_lea.vmem [#allocation2], 24
        %892 = vst [vmem:[%s891 + $0x1] sm:$0xff] %v805
        %893 = vst [vmem:[%s891 + $0x9] sm:$0xff] %v806
        %894 = vst [vmem:[%s891 + $0x19] sm:$0xff] %v807
        %895 = vst [vmem:[%s891 + $0x21] sm:$0xff] %v808
        %896 = vst [vmem:[%s891 + $0x31] sm:$0xff] %v809
        %897 = vst [vmem:[%s891 + $0x39] sm:$0xff] %v810
        %898 = vst [vmem:[%s891 + $0x49] sm:$0xff] %v811
        %899 = vst [vmem:[%s891 + $0x51] sm:$0xff] %v812
        %900 = vst [vmem:[%s891 + $0x61] sm:$0xff] %v813
        %901 = vst [vmem:[%s891 + $0x69] sm:$0xff] %v814
        %902 = vst [vmem:[%s891 + $0x79] sm:$0xff] %v815
        %903 = vst [vmem:[%s891 + $0x81] sm:$0xff] %v816
        %904 = vst [vmem:[%s891 + $0x91] sm:$0xff] %v817
        %905 = vst [vmem:[%s891 + $0x99] sm:$0xff] %v818
        %906 = vst [vmem:[%s891 + $0xa9] sm:$0xff] %v819
        %907 = vst [vmem:[%s891 + $0xb1] sm:$0xff] %v820
        %908 = vst [vmem:[%s891 + $0xc1] sm:$0xff] %v821
        %909 = vst [vmem:[%s891 + $0xc9] sm:$0xff] %v822
        %910 = vst [vmem:[%s891 + $0xd9] sm:$0xff] %v823
        %911 = vst [vmem:[%s891 + $0xe1] sm:$0xff] %v824
        %912 = vst [vmem:[%s891 + $0xf1] sm:$0xff] %v825
        %913 = vst [vmem:[%s891 + $0xf9] sm:$0xff] %v826
        %914 = vst [vmem:[%s891 + $0x109] sm:$0xff] %v827
        %915 = vst [vmem:[%s891 + $0x111] sm:$0xff] %v828
        %916 = vst [vmem:[%s891 + $0x121] sm:$0xff] %v829
        %917 = vst [vmem:[%s891 + $0x129] sm:$0xff] %v830
        %918 = vst [vmem:[%s891 + $0x139] sm:$0xff] %v831
        %919 = vst [vmem:[%s891 + $0x141] sm:$0xff] %v832
        %920 = vst [vmem:[%s891 + $0x151] sm:$0xff] %v833
        %921 = vst [vmem:[%s891 + $0x159] sm:$0xff] %v834
        %922 = vst [vmem:[%s891 + $0x169] sm:$0xff] %v835
        %923 = vst [vmem:[%s891 + $0x171] sm:$0xff] %v836
        %v924 = vld [vmem:[#allocation2] sm:$0xff]
        %v925 = vld [vmem:[#allocation2 + $0x8] sm:$0xff]
        %v926 = vld [vmem:[#allocation2 + $0x10] sm:$0x3]
        %v927 = vld [vmem:[#allocation2 + $0x18] sm:$0xff]
        %v928 = vld [vmem:[#allocation2 + $0x20] sm:$0xff]
        %v929 = vld [vmem:[#allocation2 + $0x28] sm:$0x3]
        %v930 = vld [vmem:[#allocation2 + $0x30] sm:$0xff]
        %v931 = vld [vmem:[#allocation2 + $0x38] sm:$0xff]
        %v932 = vld [vmem:[#allocation2 + $0x40] sm:$0x3]
        %v933 = vld [vmem:[#allocation2 + $0x48] sm:$0xff]
        %v934 = vld [vmem:[#allocation2 + $0x50] sm:$0xff]
        %v935 = vld [vmem:[#allocation2 + $0x58] sm:$0x3]
        %v936 = vld [vmem:[#allocation2 + $0x60] sm:$0xff]
        %v937 = vld [vmem:[#allocation2 + $0x68] sm:$0xff]
        %v938 = vld [vmem:[#allocation2 + $0x70] sm:$0x3]
        %v939 = vld [vmem:[#allocation2 + $0x78] sm:$0xff]
        %v940 = vld [vmem:[#allocation2 + $0x80] sm:$0xff]
        %v941 = vld [vmem:[#allocation2 + $0x88] sm:$0x3]
        %v942 = vld [vmem:[#allocation2 + $0x90] sm:$0xff]
        %v943 = vld [vmem:[#allocation2 + $0x98] sm:$0xff]
        %v944 = vld [vmem:[#allocation2 + $0xa0] sm:$0x3]
        %v945 = vld [vmem:[#allocation2 + $0xa8] sm:$0xff]
        %v946 = vld [vmem:[#allocation2 + $0xb0] sm:$0xff]
        %v947 = vld [vmem:[#allocation2 + $0xb8] sm:$0x3]
        %v948 = vld [vmem:[#allocation2 + $0xc0] sm:$0xff]
        %v949 = vld [vmem:[#allocation2 + $0xc8] sm:$0xff]
        %v950 = vld [vmem:[#allocation2 + $0xd0] sm:$0x3]
        %v951 = vld [vmem:[#allocation2 + $0xd8] sm:$0xff]
        %v952 = vld [vmem:[#allocation2 + $0xe0] sm:$0xff]
        %v953 = vld [vmem:[#allocation2 + $0xe8] sm:$0x3]
        %v954 = vld [vmem:[#allocation2 + $0xf0] sm:$0xff]
        %v955 = vld [vmem:[#allocation2 + $0xf8] sm:$0xff]
        %v956 = vld [vmem:[#allocation2 + $0x100] sm:$0x3]
        %v957 = vld [vmem:[#allocation2 + $0x108] sm:$0xff]
        %v958 = vld [vmem:[#allocation2 + $0x110] sm:$0xff]
        %v959 = vld [vmem:[#allocation2 + $0x118] sm:$0x3]
        %v960 = vld [vmem:[#allocation2 + $0x120] sm:$0xff]
        %v961 = vld [vmem:[#allocation2 + $0x128] sm:$0xff]
        %v962 = vld [vmem:[#allocation2 + $0x130] sm:$0x3]
        %v963 = vld [vmem:[#allocation2 + $0x138] sm:$0xff]
        %v964 = vld [vmem:[#allocation2 + $0x140] sm:$0xff]
        %v965 = vld [vmem:[#allocation2 + $0x148] sm:$0x3]
        %v966 = vld [vmem:[#allocation2 + $0x150] sm:$0xff]
        %v967 = vld [vmem:[#allocation2 + $0x158] sm:$0xff]
        %v968 = vld [vmem:[#allocation2 + $0x160] sm:$0x3]
        %v969 = vld [vmem:[#allocation2 + $0x168] sm:$0xff]
        %v970 = vld [vmem:[#allocation2 + $0x170] sm:$0xff]
        %v971 = vld [vmem:[#allocation2 + $0x178] sm:$0x3]
        %v972 = vld [vmem:[#allocation2 + $0x180] sm:$0xff]
        %v973 = vld [vmem:[#allocation2 + $0x188] sm:$0xff]
        %v974 = vld [vmem:[#allocation2 + $0x190] sm:$0x3]
        %v975 = vld [vmem:[#allocation2 + $0x198] sm:$0xff]
        %v976 = vld [vmem:[#allocation2 + $0x1a0] sm:$0xff]
        %v977 = vld [vmem:[#allocation2 + $0x1a8] sm:$0x3]
        %v978 = vld [vmem:[#allocation8] sm:$0x1]
        %v979 = vlaneseq
        %v980 = vshrl.u32 %v979, 7
        %v981 = vsub.s32 0, %v980
        %v982 = vrot.slane %v978, %v981
        %v983 = vmul.f32 %v924, %v982
        %v984 = vmul.f32 %v925, %v982
        %v985 = vmul.f32 %v927, %v982
        %v986 = vmul.f32 %v928, %v982
        %v987 = vmul.f32 %v930, %v982
        %v988 = vmul.f32 %v931, %v982
        %v989 = vmul.f32 %v933, %v982
        %v990 = vmul.f32 %v934, %v982
        %v991 = vmul.f32 %v936, %v982
        %v992 = vmul.f32 %v937, %v982
        %v993 = vmul.f32 %v939, %v982
        %v994 = vmul.f32 %v940, %v982
        %v995 = vmul.f32 %v942, %v982
        %v996 = vmul.f32 %v943, %v982
        %v997 = vmul.f32 %v945, %v982
        %v998 = vmul.f32 %v946, %v982
        %v999 = vmul.f32 %v948, %v982
        %v1000 = vmul.f32 %v949, %v982
        %v1001 = vmul.f32 %v951, %v982
        %v1002 = vmul.f32 %v952, %v982
        %v1003 = vmul.f32 %v954, %v982
        %v1004 = vmul.f32 %v955, %v982
        %v1005 = vmul.f32 %v957, %v982
        %v1006 = vmul.f32 %v958, %v982
        %v1007 = vmul.f32 %v960, %v982
        %v1008 = vmul.f32 %v961, %v982
        %v1009 = vmul.f32 %v963, %v982
        %v1010 = vmul.f32 %v964, %v982
        %v1011 = vmul.f32 %v966, %v982
        %v1012 = vmul.f32 %v967, %v982
        %v1013 = vmul.f32 %v969, %v982
        %v1014 = vmul.f32 %v970, %v982
        %v1015 = vadd.f32 %v983, 0.0
        %v1016 = vadd.f32 %v984, 0.0
        %v1017 = vadd.f32 %v985, 0.0
        %v1018 = vadd.f32 %v986, 0.0
        %v1019 = vadd.f32 %v987, 0.0
        %v1020 = vadd.f32 %v988, 0.0
        %v1021 = vadd.f32 %v989, 0.0
        %v1022 = vadd.f32 %v990, 0.0
        %v1023 = vadd.f32 %v991, 0.0
        %v1024 = vadd.f32 %v992, 0.0
        %v1025 = vadd.f32 %v993, 0.0
        %v1026 = vadd.f32 %v994, 0.0
        %v1027 = vadd.f32 %v995, 0.0
        %v1028 = vadd.f32 %v996, 0.0
        %v1029 = vadd.f32 %v997, 0.0
        %v1030 = vadd.f32 %v998, 0.0
        %v1031 = vadd.f32 %v999, 0.0
        %v1032 = vadd.f32 %v1000, 0.0
        %v1033 = vadd.f32 %v1001, 0.0
        %v1034 = vadd.f32 %v1002, 0.0
        %v1035 = vadd.f32 %v1003, 0.0
        %v1036 = vadd.f32 %v1004, 0.0
        %v1037 = vadd.f32 %v1005, 0.0
        %v1038 = vadd.f32 %v1006, 0.0
        %v1039 = vadd.f32 %v1007, 0.0
        %v1040 = vadd.f32 %v1008, 0.0
        %v1041 = vadd.f32 %v1009, 0.0
        %v1042 = vadd.f32 %v1010, 0.0
        %v1043 = vadd.f32 %v1011, 0.0
        %v1044 = vadd.f32 %v1012, 0.0
        %v1045 = vadd.f32 %v1013, 0.0
        %v1046 = vadd.f32 %v1014, 0.0
        %v1047 = vld [vmem:[#allocation8 + $0x1] sm:$0x1]
        %v1048 = vlaneseq
        %v1049 = vshrl.u32 %v1048, 7
        %v1050 = vsub.s32 0, %v1049
        %v1051 = vrot.slane %v1047, %v1050
        %v1052 = vmul.f32 %v924, %v1051
        %v1053 = vmul.f32 %v925, %v1051
        %v1054 = vmul.f32 %v926, %v1051
        %v1055 = vmul.f32 %v927, %v1051
        %v1056 = vmul.f32 %v928, %v1051
        %v1057 = vmul.f32 %v929, %v1051
        %v1058 = vmul.f32 %v930, %v1051
        %v1059 = vmul.f32 %v931, %v1051
        %v1060 = vmul.f32 %v932, %v1051
        %v1061 = vmul.f32 %v933, %v1051
        %v1062 = vmul.f32 %v934, %v1051
        %v1063 = vmul.f32 %v935, %v1051
        %v1064 = vmul.f32 %v936, %v1051
        %v1065 = vmul.f32 %v937, %v1051
        %v1066 = vmul.f32 %v938, %v1051
        %v1067 = vmul.f32 %v939, %v1051
        %v1068 = vmul.f32 %v940, %v1051
        %v1069 = vmul.f32 %v941, %v1051
        %v1070 = vmul.f32 %v942, %v1051
        %v1071 = vmul.f32 %v943, %v1051
        %v1072 = vmul.f32 %v944, %v1051
        %v1073 = vmul.f32 %v945, %v1051
        %v1074 = vmul.f32 %v946, %v1051
        %v1075 = vmul.f32 %v947, %v1051
        %v1076 = vmul.f32 %v948, %v1051
        %v1077 = vmul.f32 %v949, %v1051
        %v1078 = vmul.f32 %v950, %v1051
        %v1079 = vmul.f32 %v951, %v1051
        %v1080 = vmul.f32 %v952, %v1051
        %v1081 = vmul.f32 %v953, %v1051
        %v1082 = vmul.f32 %v954, %v1051
        %v1083 = vmul.f32 %v955, %v1051
        %v1084 = vmul.f32 %v956, %v1051
        %v1085 = vmul.f32 %v957, %v1051
        %v1086 = vmul.f32 %v958, %v1051
        %v1087 = vmul.f32 %v959, %v1051
        %v1088 = vmul.f32 %v960, %v1051
        %v1089 = vmul.f32 %v961, %v1051
        %v1090 = vmul.f32 %v962, %v1051
        %v1091 = vmul.f32 %v963, %v1051
        %v1092 = vmul.f32 %v964, %v1051
        %v1093 = vmul.f32 %v965, %v1051
        %v1094 = vmul.f32 %v966, %v1051
        %v1095 = vmul.f32 %v967, %v1051
        %v1096 = vmul.f32 %v968, %v1051
        %v1097 = vmul.f32 %v969, %v1051
        %v1098 = vmul.f32 %v970, %v1051
        %v1099 = vmul.f32 %v971, %v1051
        %vm1148 = vcmask 1046528
        %v1149 = vrot.slane %v1052, 1
        %v1150 = vrot.slane %v1053, 1
        %v1151 = vsel %vm1148, %v1149, %v1150
        %v1152 = vrot.slane %v1054, 1
        %v1153 = vsel %vm1148, %v1150, %v1152
        %v1154 = vrot.slane %v1055, 1
        %v1155 = vrot.slane %v1056, 1
        %v1156 = vsel %vm1148, %v1154, %v1155
        %v1157 = vrot.slane %v1057, 1
        %v1158 = vsel %vm1148, %v1155, %v1157
        %v1159 = vrot.slane %v1058, 1
        %v1160 = vrot.slane %v1059, 1
        %v1161 = vsel %vm1148, %v1159, %v1160
        %v1162 = vrot.slane %v1060, 1
        %v1163 = vsel %vm1148, %v1160, %v1162
        %v1164 = vrot.slane %v1061, 1
        %v1165 = vrot.slane %v1062, 1
        %v1166 = vsel %vm1148, %v1164, %v1165
        %v1167 = vrot.slane %v1063, 1
        %v1168 = vsel %vm1148, %v1165, %v1167
        %v1169 = vrot.slane %v1064, 1
        %v1170 = vrot.slane %v1065, 1
        %v1171 = vsel %vm1148, %v1169, %v1170
        %v1172 = vrot.slane %v1066, 1
        %v1173 = vsel %vm1148, %v1170, %v1172
        %v1174 = vrot.slane %v1067, 1
        %v1175 = vrot.slane %v1068, 1
        %v1176 = vsel %vm1148, %v1174, %v1175
        %v1177 = vrot.slane %v1069, 1
        %v1178 = vsel %vm1148, %v1175, %v1177
        %v1179 = vrot.slane %v1070, 1
        %v1180 = vrot.slane %v1071, 1
        %v1181 = vsel %vm1148, %v1179, %v1180
        %v1182 = vrot.slane %v1072, 1
        %v1183 = vsel %vm1148, %v1180, %v1182
        %v1184 = vrot.slane %v1073, 1
        %v1185 = vrot.slane %v1074, 1
        %v1186 = vsel %vm1148, %v1184, %v1185
        %v1187 = vrot.slane %v1075, 1
        %v1188 = vsel %vm1148, %v1185, %v1187
        %v1189 = vrot.slane %v1076, 1
        %v1190 = vrot.slane %v1077, 1
        %v1191 = vsel %vm1148, %v1189, %v1190
        %v1192 = vrot.slane %v1078, 1
        %v1193 = vsel %vm1148, %v1190, %v1192
        %v1194 = vrot.slane %v1079, 1
        %v1195 = vrot.slane %v1080, 1
        %v1196 = vsel %vm1148, %v1194, %v1195
        %v1197 = vrot.slane %v1081, 1
        %v1198 = vsel %vm1148, %v1195, %v1197
        %v1199 = vrot.slane %v1082, 1
        %v1200 = vrot.slane %v1083, 1
        %v1201 = vsel %vm1148, %v1199, %v1200
        %v1202 = vrot.slane %v1084, 1
        %v1203 = vsel %vm1148, %v1200, %v1202
        %v1204 = vrot.slane %v1085, 1
        %v1205 = vrot.slane %v1086, 1
        %v1206 = vsel %vm1148, %v1204, %v1205
        %v1207 = vrot.slane %v1087, 1
        %v1208 = vsel %vm1148, %v1205, %v1207
        %v1209 = vrot.slane %v1088, 1
        %v1210 = vrot.slane %v1089, 1
        %v1211 = vsel %vm1148, %v1209, %v1210
        %v1212 = vrot.slane %v1090, 1
        %v1213 = vsel %vm1148, %v1210, %v1212
        %v1214 = vrot.slane %v1091, 1
        %v1215 = vrot.slane %v1092, 1
        %v1216 = vsel %vm1148, %v1214, %v1215
        %v1217 = vrot.slane %v1093, 1
        %v1218 = vsel %vm1148, %v1215, %v1217
        %v1219 = vrot.slane %v1094, 1
        %v1220 = vrot.slane %v1095, 1
        %v1221 = vsel %vm1148, %v1219, %v1220
        %v1222 = vrot.slane %v1096, 1
        %v1223 = vsel %vm1148, %v1220, %v1222
        %v1224 = vrot.slane %v1097, 1
        %v1225 = vrot.slane %v1098, 1
        %v1226 = vsel %vm1148, %v1224, %v1225
        %v1227 = vrot.slane %v1099, 1
        %v1228 = vsel %vm1148, %v1225, %v1227
        %v1261 = vadd.f32 %v1015, %v1151
        %v1262 = vadd.f32 %v1016, %v1153
        %v1263 = vadd.f32 %v1017, %v1156
        %v1264 = vadd.f32 %v1018, %v1158
        %v1265 = vadd.f32 %v1019, %v1161
        %v1266 = vadd.f32 %v1020, %v1163
        %v1267 = vadd.f32 %v1021, %v1166
        %v1268 = vadd.f32 %v1022, %v1168
        %v1269 = vadd.f32 %v1023, %v1171
        %v1270 = vadd.f32 %v1024, %v1173
        %v1271 = vadd.f32 %v1025, %v1176
        %v1272 = vadd.f32 %v1026, %v1178
        %v1273 = vadd.f32 %v1027, %v1181
        %v1274 = vadd.f32 %v1028, %v1183
        %v1275 = vadd.f32 %v1029, %v1186
        %v1276 = vadd.f32 %v1030, %v1188
        %v1277 = vadd.f32 %v1031, %v1191
        %v1278 = vadd.f32 %v1032, %v1193
        %v1279 = vadd.f32 %v1033, %v1196
        %v1280 = vadd.f32 %v1034, %v1198
        %v1281 = vadd.f32 %v1035, %v1201
        %v1282 = vadd.f32 %v1036, %v1203
        %v1283 = vadd.f32 %v1037, %v1206
        %v1284 = vadd.f32 %v1038, %v1208
        %v1285 = vadd.f32 %v1039, %v1211
        %v1286 = vadd.f32 %v1040, %v1213
        %v1287 = vadd.f32 %v1041, %v1216
        %v1288 = vadd.f32 %v1042, %v1218
        %v1289 = vadd.f32 %v1043, %v1221
        %v1290 = vadd.f32 %v1044, %v1223
        %v1291 = vadd.f32 %v1045, %v1226
        %v1292 = vadd.f32 %v1046, %v1228
        %v1293 = vld [vmem:[#allocation8 + $0x2] sm:$0x1]
        %v1294 = vlaneseq
        %v1295 = vshrl.u32 %v1294, 7
        %v1296 = vsub.s32 0, %v1295
        %v1297 = vrot.slane %v1293, %v1296
        %v1298 = vmul.f32 %v924, %v1297
        %v1299 = vmul.f32 %v925, %v1297
        %v1300 = vmul.f32 %v926, %v1297
        %v1301 = vmul.f32 %v927, %v1297
        %v1302 = vmul.f32 %v928, %v1297
        %v1303 = vmul.f32 %v929, %v1297
        %v1304 = vmul.f32 %v930, %v1297
        %v1305 = vmul.f32 %v931, %v1297
        %v1306 = vmul.f32 %v932, %v1297
        %v1307 = vmul.f32 %v933, %v1297
        %v1308 = vmul.f32 %v934, %v1297
        %v1309 = vmul.f32 %v935, %v1297
        %v1310 = vmul.f32 %v936, %v1297
        %v1311 = vmul.f32 %v937, %v1297
        %v1312 = vmul.f32 %v938, %v1297
        %v1313 = vmul.f32 %v939, %v1297
        %v1314 = vmul.f32 %v940, %v1297
        %v1315 = vmul.f32 %v941, %v1297
        %v1316 = vmul.f32 %v942, %v1297
        %v1317 = vmul.f32 %v943, %v1297
        %v1318 = vmul.f32 %v944, %v1297
        %v1319 = vmul.f32 %v945, %v1297
        %v1320 = vmul.f32 %v946, %v1297
        %v1321 = vmul.f32 %v947, %v1297
        %v1322 = vmul.f32 %v948, %v1297
        %v1323 = vmul.f32 %v949, %v1297
        %v1324 = vmul.f32 %v950, %v1297
        %v1325 = vmul.f32 %v951, %v1297
        %v1326 = vmul.f32 %v952, %v1297
        %v1327 = vmul.f32 %v953, %v1297
        %v1328 = vmul.f32 %v954, %v1297
        %v1329 = vmul.f32 %v955, %v1297
        %v1330 = vmul.f32 %v956, %v1297
        %v1331 = vmul.f32 %v957, %v1297
        %v1332 = vmul.f32 %v958, %v1297
        %v1333 = vmul.f32 %v959, %v1297
        %v1334 = vmul.f32 %v960, %v1297
        %v1335 = vmul.f32 %v961, %v1297
        %v1336 = vmul.f32 %v962, %v1297
        %v1337 = vmul.f32 %v963, %v1297
        %v1338 = vmul.f32 %v964, %v1297
        %v1339 = vmul.f32 %v965, %v1297
        %v1340 = vmul.f32 %v966, %v1297
        %v1341 = vmul.f32 %v967, %v1297
        %v1342 = vmul.f32 %v968, %v1297
        %v1343 = vmul.f32 %v969, %v1297
        %v1344 = vmul.f32 %v970, %v1297
        %v1345 = vmul.f32 %v971, %v1297
        %vm1394 = vcmask 1045504
        %v1395 = vrot.slane %v1298, 2
        %v1396 = vrot.slane %v1299, 2
        %v1397 = vsel %vm1394, %v1395, %v1396
        %v1398 = vrot.slane %v1300, 2
        %v1399 = vsel %vm1394, %v1396, %v1398
        %v1400 = vrot.slane %v1301, 2
        %v1401 = vrot.slane %v1302, 2
        %v1402 = vsel %vm1394, %v1400, %v1401
        %v1403 = vrot.slane %v1303, 2
        %v1404 = vsel %vm1394, %v1401, %v1403
        %v1405 = vrot.slane %v1304, 2
        %v1406 = vrot.slane %v1305, 2
        %v1407 = vsel %vm1394, %v1405, %v1406
        %v1408 = vrot.slane %v1306, 2
        %v1409 = vsel %vm1394, %v1406, %v1408
        %v1410 = vrot.slane %v1307, 2
        %v1411 = vrot.slane %v1308, 2
        %v1412 = vsel %vm1394, %v1410, %v1411
        %v1413 = vrot.slane %v1309, 2
        %v1414 = vsel %vm1394, %v1411, %v1413
        %v1415 = vrot.slane %v1310, 2
        %v1416 = vrot.slane %v1311, 2
        %v1417 = vsel %vm1394, %v1415, %v1416
        %v1418 = vrot.slane %v1312, 2
        %v1419 = vsel %vm1394, %v1416, %v1418
        %v1420 = vrot.slane %v1313, 2
        %v1421 = vrot.slane %v1314, 2
        %v1422 = vsel %vm1394, %v1420, %v1421
        %v1423 = vrot.slane %v1315, 2
        %v1424 = vsel %vm1394, %v1421, %v1423
        %v1425 = vrot.slane %v1316, 2
        %v1426 = vrot.slane %v1317, 2
        %v1427 = vsel %vm1394, %v1425, %v1426
        %v1428 = vrot.slane %v1318, 2
        %v1429 = vsel %vm1394, %v1426, %v1428
        %v1430 = vrot.slane %v1319, 2
        %v1431 = vrot.slane %v1320, 2
        %v1432 = vsel %vm1394, %v1430, %v1431
        %v1433 = vrot.slane %v1321, 2
        %v1434 = vsel %vm1394, %v1431, %v1433
        %v1435 = vrot.slane %v1322, 2
        %v1436 = vrot.slane %v1323, 2
        %v1437 = vsel %vm1394, %v1435, %v1436
        %v1438 = vrot.slane %v1324, 2
        %v1439 = vsel %vm1394, %v1436, %v1438
        %v1440 = vrot.slane %v1325, 2
        %v1441 = vrot.slane %v1326, 2
        %v1442 = vsel %vm1394, %v1440, %v1441
        %v1443 = vrot.slane %v1327, 2
        %v1444 = vsel %vm1394, %v1441, %v1443
        %v1445 = vrot.slane %v1328, 2
        %v1446 = vrot.slane %v1329, 2
        %v1447 = vsel %vm1394, %v1445, %v1446
        %v1448 = vrot.slane %v1330, 2
        %v1449 = vsel %vm1394, %v1446, %v1448
        %v1450 = vrot.slane %v1331, 2
        %v1451 = vrot.slane %v1332, 2
        %v1452 = vsel %vm1394, %v1450, %v1451
        %v1453 = vrot.slane %v1333, 2
        %v1454 = vsel %vm1394, %v1451, %v1453
        %v1455 = vrot.slane %v1334, 2
        %v1456 = vrot.slane %v1335, 2
        %v1457 = vsel %vm1394, %v1455, %v1456
        %v1458 = vrot.slane %v1336, 2
        %v1459 = vsel %vm1394, %v1456, %v1458
        %v1460 = vrot.slane %v1337, 2
        %v1461 = vrot.slane %v1338, 2
        %v1462 = vsel %vm1394, %v1460, %v1461
        %v1463 = vrot.slane %v1339, 2
        %v1464 = vsel %vm1394, %v1461, %v1463
        %v1465 = vrot.slane %v1340, 2
        %v1466 = vrot.slane %v1341, 2
        %v1467 = vsel %vm1394, %v1465, %v1466
        %v1468 = vrot.slane %v1342, 2
        %v1469 = vsel %vm1394, %v1466, %v1468
        %v1470 = vrot.slane %v1343, 2
        %v1471 = vrot.slane %v1344, 2
        %v1472 = vsel %vm1394, %v1470, %v1471
        %v1473 = vrot.slane %v1345, 2
        %v1474 = vsel %vm1394, %v1471, %v1473
        %v1507 = vadd.f32 %v1261, %v1397
        %v1508 = vadd.f32 %v1262, %v1399
        %v1509 = vadd.f32 %v1263, %v1402
        %v1510 = vadd.f32 %v1264, %v1404
        %v1511 = vadd.f32 %v1265, %v1407
        %v1512 = vadd.f32 %v1266, %v1409
        %v1513 = vadd.f32 %v1267, %v1412
        %v1514 = vadd.f32 %v1268, %v1414
        %v1515 = vadd.f32 %v1269, %v1417
        %v1516 = vadd.f32 %v1270, %v1419
        %v1517 = vadd.f32 %v1271, %v1422
        %v1518 = vadd.f32 %v1272, %v1424
        %v1519 = vadd.f32 %v1273, %v1427
        %v1520 = vadd.f32 %v1274, %v1429
        %v1521 = vadd.f32 %v1275, %v1432
        %v1522 = vadd.f32 %v1276, %v1434
        %v1523 = vadd.f32 %v1277, %v1437
        %v1524 = vadd.f32 %v1278, %v1439
        %v1525 = vadd.f32 %v1279, %v1442
        %v1526 = vadd.f32 %v1280, %v1444
        %v1527 = vadd.f32 %v1281, %v1447
        %v1528 = vadd.f32 %v1282, %v1449
        %v1529 = vadd.f32 %v1283, %v1452
        %v1530 = vadd.f32 %v1284, %v1454
        %v1531 = vadd.f32 %v1285, %v1457
        %v1532 = vadd.f32 %v1286, %v1459
        %v1533 = vadd.f32 %v1287, %v1462
        %v1534 = vadd.f32 %v1288, %v1464
        %v1535 = vadd.f32 %v1289, %v1467
        %v1536 = vadd.f32 %v1290, %v1469
        %v1537 = vadd.f32 %v1291, %v1472
        %v1538 = vadd.f32 %v1292, %v1474
        %v1539 = vld [vmem:[#allocation8 + $0x3] sm:$0x1]
        %v1540 = vlaneseq
        %v1541 = vshrl.u32 %v1540, 7
        %v1542 = vsub.s32 0, %v1541
        %v1543 = vrot.slane %v1539, %v1542
        %v1544 = vmul.f32 %v927, %v1543
        %v1545 = vmul.f32 %v928, %v1543
        %v1546 = vmul.f32 %v930, %v1543
        %v1547 = vmul.f32 %v931, %v1543
        %v1548 = vmul.f32 %v933, %v1543
        %v1549 = vmul.f32 %v934, %v1543
        %v1550 = vmul.f32 %v936, %v1543
        %v1551 = vmul.f32 %v937, %v1543
        %v1552 = vmul.f32 %v939, %v1543
        %v1553 = vmul.f32 %v940, %v1543
        %v1554 = vmul.f32 %v942, %v1543
        %v1555 = vmul.f32 %v943, %v1543
        %v1556 = vmul.f32 %v945, %v1543
        %v1557 = vmul.f32 %v946, %v1543
        %v1558 = vmul.f32 %v948, %v1543
        %v1559 = vmul.f32 %v949, %v1543
        %v1560 = vmul.f32 %v951, %v1543
        %v1561 = vmul.f32 %v952, %v1543
        %v1562 = vmul.f32 %v954, %v1543
        %v1563 = vmul.f32 %v955, %v1543
        %v1564 = vmul.f32 %v957, %v1543
        %v1565 = vmul.f32 %v958, %v1543
        %v1566 = vmul.f32 %v960, %v1543
        %v1567 = vmul.f32 %v961, %v1543
        %v1568 = vmul.f32 %v963, %v1543
        %v1569 = vmul.f32 %v964, %v1543
        %v1570 = vmul.f32 %v966, %v1543
        %v1571 = vmul.f32 %v967, %v1543
        %v1572 = vmul.f32 %v969, %v1543
        %v1573 = vmul.f32 %v970, %v1543
        %v1574 = vmul.f32 %v972, %v1543
        %v1575 = vmul.f32 %v973, %v1543
        %v1576 = vadd.f32 %v1507, %v1544
        %v1577 = vadd.f32 %v1508, %v1545
        %v1578 = vadd.f32 %v1509, %v1546
        %v1579 = vadd.f32 %v1510, %v1547
        %v1580 = vadd.f32 %v1511, %v1548
        %v1581 = vadd.f32 %v1512, %v1549
        %v1582 = vadd.f32 %v1513, %v1550
        %v1583 = vadd.f32 %v1514, %v1551
        %v1584 = vadd.f32 %v1515, %v1552
        %v1585 = vadd.f32 %v1516, %v1553
        %v1586 = vadd.f32 %v1517, %v1554
        %v1587 = vadd.f32 %v1518, %v1555
        %v1588 = vadd.f32 %v1519, %v1556
        %v1589 = vadd.f32 %v1520, %v1557
        %v1590 = vadd.f32 %v1521, %v1558
        %v1591 = vadd.f32 %v1522, %v1559
        %v1592 = vadd.f32 %v1523, %v1560
        %v1593 = vadd.f32 %v1524, %v1561
        %v1594 = vadd.f32 %v1525, %v1562
        %v1595 = vadd.f32 %v1526, %v1563
        %v1596 = vadd.f32 %v1527, %v1564
        %v1597 = vadd.f32 %v1528, %v1565
        %v1598 = vadd.f32 %v1529, %v1566
        %v1599 = vadd.f32 %v1530, %v1567
        %v1600 = vadd.f32 %v1531, %v1568
        %v1601 = vadd.f32 %v1532, %v1569
        %v1602 = vadd.f32 %v1533, %v1570
        %v1603 = vadd.f32 %v1534, %v1571
        %v1604 = vadd.f32 %v1535, %v1572
        %v1605 = vadd.f32 %v1536, %v1573
        %v1606 = vadd.f32 %v1537, %v1574
        %v1607 = vadd.f32 %v1538, %v1575
        %v1608 = vld [vmem:[#allocation8 + $0x4] sm:$0x1]
        %v1609 = vlaneseq
        %v1610 = vshrl.u32 %v1609, 7
        %v1611 = vsub.s32 0, %v1610
        %v1612 = vrot.slane %v1608, %v1611
        %v1613 = vmul.f32 %v927, %v1612
        %v1614 = vmul.f32 %v928, %v1612
        %v1615 = vmul.f32 %v929, %v1612
        %v1616 = vmul.f32 %v930, %v1612
        %v1617 = vmul.f32 %v931, %v1612
        %v1618 = vmul.f32 %v932, %v1612
        %v1619 = vmul.f32 %v933, %v1612
        %v1620 = vmul.f32 %v934, %v1612
        %v1621 = vmul.f32 %v935, %v1612
        %v1622 = vmul.f32 %v936, %v1612
        %v1623 = vmul.f32 %v937, %v1612
        %v1624 = vmul.f32 %v938, %v1612
        %v1625 = vmul.f32 %v939, %v1612
        %v1626 = vmul.f32 %v940, %v1612
        %v1627 = vmul.f32 %v941, %v1612
        %v1628 = vmul.f32 %v942, %v1612
        %v1629 = vmul.f32 %v943, %v1612
        %v1630 = vmul.f32 %v944, %v1612
        %v1631 = vmul.f32 %v945, %v1612
        %v1632 = vmul.f32 %v946, %v1612
        %v1633 = vmul.f32 %v947, %v1612
        %v1634 = vmul.f32 %v948, %v1612
        %v1635 = vmul.f32 %v949, %v1612
        %v1636 = vmul.f32 %v950, %v1612
        %v1637 = vmul.f32 %v951, %v1612
        %v1638 = vmul.f32 %v952, %v1612
        %v1639 = vmul.f32 %v953, %v1612
        %v1640 = vmul.f32 %v954, %v1612
        %v1641 = vmul.f32 %v955, %v1612
        %v1642 = vmul.f32 %v956, %v1612
        %v1643 = vmul.f32 %v957, %v1612
        %v1644 = vmul.f32 %v958, %v1612
        %v1645 = vmul.f32 %v959, %v1612
        %v1646 = vmul.f32 %v960, %v1612
        %v1647 = vmul.f32 %v961, %v1612
        %v1648 = vmul.f32 %v962, %v1612
        %v1649 = vmul.f32 %v963, %v1612
        %v1650 = vmul.f32 %v964, %v1612
        %v1651 = vmul.f32 %v965, %v1612
        %v1652 = vmul.f32 %v966, %v1612
        %v1653 = vmul.f32 %v967, %v1612
        %v1654 = vmul.f32 %v968, %v1612
        %v1655 = vmul.f32 %v969, %v1612
        %v1656 = vmul.f32 %v970, %v1612
        %v1657 = vmul.f32 %v971, %v1612
        %v1658 = vmul.f32 %v972, %v1612
        %v1659 = vmul.f32 %v973, %v1612
        %v1660 = vmul.f32 %v974, %v1612
        %v1709 = vrot.slane %v1613, 1
        %v1710 = vrot.slane %v1614, 1
        %v1711 = vsel %vm1148, %v1709, %v1710
        %v1712 = vrot.slane %v1615, 1
        %v1713 = vsel %vm1148, %v1710, %v1712
        %v1714 = vrot.slane %v1616, 1
        %v1715 = vrot.slane %v1617, 1
        %v1716 = vsel %vm1148, %v1714, %v1715
        %v1717 = vrot.slane %v1618, 1
        %v1718 = vsel %vm1148, %v1715, %v1717
        %v1719 = vrot.slane %v1619, 1
        %v1720 = vrot.slane %v1620, 1
        %v1721 = vsel %vm1148, %v1719, %v1720
        %v1722 = vrot.slane %v1621, 1
        %v1723 = vsel %vm1148, %v1720, %v1722
        %v1724 = vrot.slane %v1622, 1
        %v1725 = vrot.slane %v1623, 1
        %v1726 = vsel %vm1148, %v1724, %v1725
        %v1727 = vrot.slane %v1624, 1
        %v1728 = vsel %vm1148, %v1725, %v1727
        %v1729 = vrot.slane %v1625, 1
        %v1730 = vrot.slane %v1626, 1
        %v1731 = vsel %vm1148, %v1729, %v1730
        %v1732 = vrot.slane %v1627, 1
        %v1733 = vsel %vm1148, %v1730, %v1732
        %v1734 = vrot.slane %v1628, 1
        %v1735 = vrot.slane %v1629, 1
        %v1736 = vsel %vm1148, %v1734, %v1735
        %v1737 = vrot.slane %v1630, 1
        %v1738 = vsel %vm1148, %v1735, %v1737
        %v1739 = vrot.slane %v1631, 1
        %v1740 = vrot.slane %v1632, 1
        %v1741 = vsel %vm1148, %v1739, %v1740
        %v1742 = vrot.slane %v1633, 1
        %v1743 = vsel %vm1148, %v1740, %v1742
        %v1744 = vrot.slane %v1634, 1
        %v1745 = vrot.slane %v1635, 1
        %v1746 = vsel %vm1148, %v1744, %v1745
        %v1747 = vrot.slane %v1636, 1
        %v1748 = vsel %vm1148, %v1745, %v1747
        %v1749 = vrot.slane %v1637, 1
        %v1750 = vrot.slane %v1638, 1
        %v1751 = vsel %vm1148, %v1749, %v1750
        %v1752 = vrot.slane %v1639, 1
        %v1753 = vsel %vm1148, %v1750, %v1752
        %v1754 = vrot.slane %v1640, 1
        %v1755 = vrot.slane %v1641, 1
        %v1756 = vsel %vm1148, %v1754, %v1755
        %v1757 = vrot.slane %v1642, 1
        %v1758 = vsel %vm1148, %v1755, %v1757
        %v1759 = vrot.slane %v1643, 1
        %v1760 = vrot.slane %v1644, 1
        %v1761 = vsel %vm1148, %v1759, %v1760
        %v1762 = vrot.slane %v1645, 1
        %v1763 = vsel %vm1148, %v1760, %v1762
        %v1764 = vrot.slane %v1646, 1
        %v1765 = vrot.slane %v1647, 1
        %v1766 = vsel %vm1148, %v1764, %v1765
        %v1767 = vrot.slane %v1648, 1
        %v1768 = vsel %vm1148, %v1765, %v1767
        %v1769 = vrot.slane %v1649, 1
        %v1770 = vrot.slane %v1650, 1
        %v1771 = vsel %vm1148, %v1769, %v1770
        %v1772 = vrot.slane %v1651, 1
        %v1773 = vsel %vm1148, %v1770, %v1772
        %v1774 = vrot.slane %v1652, 1
        %v1775 = vrot.slane %v1653, 1
        %v1776 = vsel %vm1148, %v1774, %v1775
        %v1777 = vrot.slane %v1654, 1
        %v1778 = vsel %vm1148, %v1775, %v1777
        %v1779 = vrot.slane %v1655, 1
        %v1780 = vrot.slane %v1656, 1
        %v1781 = vsel %vm1148, %v1779, %v1780
        %v1782 = vrot.slane %v1657, 1
        %v1783 = vsel %vm1148, %v1780, %v1782
        %v1784 = vrot.slane %v1658, 1
        %v1785 = vrot.slane %v1659, 1
        %v1786 = vsel %vm1148, %v1784, %v1785
        %v1787 = vrot.slane %v1660, 1
        %v1788 = vsel %vm1148, %v1785, %v1787
        %v1821 = vadd.f32 %v1576, %v1711
        %v1822 = vadd.f32 %v1577, %v1713
        %v1823 = vadd.f32 %v1578, %v1716
        %v1824 = vadd.f32 %v1579, %v1718
        %v1825 = vadd.f32 %v1580, %v1721
        %v1826 = vadd.f32 %v1581, %v1723
        %v1827 = vadd.f32 %v1582, %v1726
        %v1828 = vadd.f32 %v1583, %v1728
        %v1829 = vadd.f32 %v1584, %v1731
        %v1830 = vadd.f32 %v1585, %v1733
        %v1831 = vadd.f32 %v1586, %v1736
        %v1832 = vadd.f32 %v1587, %v1738
        %v1833 = vadd.f32 %v1588, %v1741
        %v1834 = vadd.f32 %v1589, %v1743
        %v1835 = vadd.f32 %v1590, %v1746
        %v1836 = vadd.f32 %v1591, %v1748
        %v1837 = vadd.f32 %v1592, %v1751
        %v1838 = vadd.f32 %v1593, %v1753
        %v1839 = vadd.f32 %v1594, %v1756
        %v1840 = vadd.f32 %v1595, %v1758
        %v1841 = vadd.f32 %v1596, %v1761
        %v1842 = vadd.f32 %v1597, %v1763
        %v1843 = vadd.f32 %v1598, %v1766
        %v1844 = vadd.f32 %v1599, %v1768
        %v1845 = vadd.f32 %v1600, %v1771
        %v1846 = vadd.f32 %v1601, %v1773
        %v1847 = vadd.f32 %v1602, %v1776
        %v1848 = vadd.f32 %v1603, %v1778
        %v1849 = vadd.f32 %v1604, %v1781
        %v1850 = vadd.f32 %v1605, %v1783
        %v1851 = vadd.f32 %v1606, %v1786
        %v1852 = vadd.f32 %v1607, %v1788
        %v1853 = vld [vmem:[#allocation8 + $0x5] sm:$0x1]
        %v1854 = vlaneseq
        %v1855 = vshrl.u32 %v1854, 7
        %v1856 = vsub.s32 0, %v1855
        %v1857 = vrot.slane %v1853, %v1856
        %v1858 = vmul.f32 %v927, %v1857
        %v1859 = vmul.f32 %v928, %v1857
        %v1860 = vmul.f32 %v929, %v1857
        %v1861 = vmul.f32 %v930, %v1857
        %v1862 = vmul.f32 %v931, %v1857
        %v1863 = vmul.f32 %v932, %v1857
        %v1864 = vmul.f32 %v933, %v1857
        %v1865 = vmul.f32 %v934, %v1857
        %v1866 = vmul.f32 %v935, %v1857
        %v1867 = vmul.f32 %v936, %v1857
        %v1868 = vmul.f32 %v937, %v1857
        %v1869 = vmul.f32 %v938, %v1857
        %v1870 = vmul.f32 %v939, %v1857
        %v1871 = vmul.f32 %v940, %v1857
        %v1872 = vmul.f32 %v941, %v1857
        %v1873 = vmul.f32 %v942, %v1857
        %v1874 = vmul.f32 %v943, %v1857
        %v1875 = vmul.f32 %v944, %v1857
        %v1876 = vmul.f32 %v945, %v1857
        %v1877 = vmul.f32 %v946, %v1857
        %v1878 = vmul.f32 %v947, %v1857
        %v1879 = vmul.f32 %v948, %v1857
        %v1880 = vmul.f32 %v949, %v1857
        %v1881 = vmul.f32 %v950, %v1857
        %v1882 = vmul.f32 %v951, %v1857
        %v1883 = vmul.f32 %v952, %v1857
        %v1884 = vmul.f32 %v953, %v1857
        %v1885 = vmul.f32 %v954, %v1857
        %v1886 = vmul.f32 %v955, %v1857
        %v1887 = vmul.f32 %v956, %v1857
        %v1888 = vmul.f32 %v957, %v1857
        %v1889 = vmul.f32 %v958, %v1857
        %v1890 = vmul.f32 %v959, %v1857
        %v1891 = vmul.f32 %v960, %v1857
        %v1892 = vmul.f32 %v961, %v1857
        %v1893 = vmul.f32 %v962, %v1857
        %v1894 = vmul.f32 %v963, %v1857
        %v1895 = vmul.f32 %v964, %v1857
        %v1896 = vmul.f32 %v965, %v1857
        %v1897 = vmul.f32 %v966, %v1857
        %v1898 = vmul.f32 %v967, %v1857
        %v1899 = vmul.f32 %v968, %v1857
        %v1900 = vmul.f32 %v969, %v1857
        %v1901 = vmul.f32 %v970, %v1857
        %v1902 = vmul.f32 %v971, %v1857
        %v1903 = vmul.f32 %v972, %v1857
        %v1904 = vmul.f32 %v973, %v1857
        %v1905 = vmul.f32 %v974, %v1857
        %v1954 = vrot.slane %v1858, 2
        %v1955 = vrot.slane %v1859, 2
        %v1956 = vsel %vm1394, %v1954, %v1955
        %v1957 = vrot.slane %v1860, 2
        %v1958 = vsel %vm1394, %v1955, %v1957
        %v1959 = vrot.slane %v1861, 2
        %v1960 = vrot.slane %v1862, 2
        %v1961 = vsel %vm1394, %v1959, %v1960
        %v1962 = vrot.slane %v1863, 2
        %v1963 = vsel %vm1394, %v1960, %v1962
        %v1964 = vrot.slane %v1864, 2
        %v1965 = vrot.slane %v1865, 2
        %v1966 = vsel %vm1394, %v1964, %v1965
        %v1967 = vrot.slane %v1866, 2
        %v1968 = vsel %vm1394, %v1965, %v1967
        %v1969 = vrot.slane %v1867, 2
        %v1970 = vrot.slane %v1868, 2
        %v1971 = vsel %vm1394, %v1969, %v1970
        %v1972 = vrot.slane %v1869, 2
        %v1973 = vsel %vm1394, %v1970, %v1972
        %v1974 = vrot.slane %v1870, 2
        %v1975 = vrot.slane %v1871, 2
        %v1976 = vsel %vm1394, %v1974, %v1975
        %v1977 = vrot.slane %v1872, 2
        %v1978 = vsel %vm1394, %v1975, %v1977
        %v1979 = vrot.slane %v1873, 2
        %v1980 = vrot.slane %v1874, 2
        %v1981 = vsel %vm1394, %v1979, %v1980
        %v1982 = vrot.slane %v1875, 2
        %v1983 = vsel %vm1394, %v1980, %v1982
        %v1984 = vrot.slane %v1876, 2
        %v1985 = vrot.slane %v1877, 2
        %v1986 = vsel %vm1394, %v1984, %v1985
        %v1987 = vrot.slane %v1878, 2
        %v1988 = vsel %vm1394, %v1985, %v1987
        %v1989 = vrot.slane %v1879, 2
        %v1990 = vrot.slane %v1880, 2
        %v1991 = vsel %vm1394, %v1989, %v1990
        %v1992 = vrot.slane %v1881, 2
        %v1993 = vsel %vm1394, %v1990, %v1992
        %v1994 = vrot.slane %v1882, 2
        %v1995 = vrot.slane %v1883, 2
        %v1996 = vsel %vm1394, %v1994, %v1995
        %v1997 = vrot.slane %v1884, 2
        %v1998 = vsel %vm1394, %v1995, %v1997
        %v1999 = vrot.slane %v1885, 2
        %v2000 = vrot.slane %v1886, 2
        %v2001 = vsel %vm1394, %v1999, %v2000
        %v2002 = vrot.slane %v1887, 2
        %v2003 = vsel %vm1394, %v2000, %v2002
        %v2004 = vrot.slane %v1888, 2
        %v2005 = vrot.slane %v1889, 2
        %v2006 = vsel %vm1394, %v2004, %v2005
        %v2007 = vrot.slane %v1890, 2
        %v2008 = vsel %vm1394, %v2005, %v2007
        %v2009 = vrot.slane %v1891, 2
        %v2010 = vrot.slane %v1892, 2
        %v2011 = vsel %vm1394, %v2009, %v2010
        %v2012 = vrot.slane %v1893, 2
        %v2013 = vsel %vm1394, %v2010, %v2012
        %v2014 = vrot.slane %v1894, 2
        %v2015 = vrot.slane %v1895, 2
        %v2016 = vsel %vm1394, %v2014, %v2015
        %v2017 = vrot.slane %v1896, 2
        %v2018 = vsel %vm1394, %v2015, %v2017
        %v2019 = vrot.slane %v1897, 2
        %v2020 = vrot.slane %v1898, 2
        %v2021 = vsel %vm1394, %v2019, %v2020
        %v2022 = vrot.slane %v1899, 2
        %v2023 = vsel %vm1394, %v2020, %v2022
        %v2024 = vrot.slane %v1900, 2
        %v2025 = vrot.slane %v1901, 2
        %v2026 = vsel %vm1394, %v2024, %v2025
        %v2027 = vrot.slane %v1902, 2
        %v2028 = vsel %vm1394, %v2025, %v2027
        %v2029 = vrot.slane %v1903, 2
        %v2030 = vrot.slane %v1904, 2
        %v2031 = vsel %vm1394, %v2029, %v2030
        %v2032 = vrot.slane %v1905, 2
        %v2033 = vsel %vm1394, %v2030, %v2032
        %v2066 = vadd.f32 %v1821, %v1956
        %v2067 = vadd.f32 %v1822, %v1958
        %v2068 = vadd.f32 %v1823, %v1961
        %v2069 = vadd.f32 %v1824, %v1963
        %v2070 = vadd.f32 %v1825, %v1966
        %v2071 = vadd.f32 %v1826, %v1968
        %v2072 = vadd.f32 %v1827, %v1971
        %v2073 = vadd.f32 %v1828, %v1973
        %v2074 = vadd.f32 %v1829, %v1976
        %v2075 = vadd.f32 %v1830, %v1978
        %v2076 = vadd.f32 %v1831, %v1981
        %v2077 = vadd.f32 %v1832, %v1983
        %v2078 = vadd.f32 %v1833, %v1986
        %v2079 = vadd.f32 %v1834, %v1988
        %v2080 = vadd.f32 %v1835, %v1991
        %v2081 = vadd.f32 %v1836, %v1993
        %v2082 = vadd.f32 %v1837, %v1996
        %v2083 = vadd.f32 %v1838, %v1998
        %v2084 = vadd.f32 %v1839, %v2001
        %v2085 = vadd.f32 %v1840, %v2003
        %v2086 = vadd.f32 %v1841, %v2006
        %v2087 = vadd.f32 %v1842, %v2008
        %v2088 = vadd.f32 %v1843, %v2011
        %v2089 = vadd.f32 %v1844, %v2013
        %v2090 = vadd.f32 %v1845, %v2016
        %v2091 = vadd.f32 %v1846, %v2018
        %v2092 = vadd.f32 %v1847, %v2021
        %v2093 = vadd.f32 %v1848, %v2023
        %v2094 = vadd.f32 %v1849, %v2026
        %v2095 = vadd.f32 %v1850, %v2028
        %v2096 = vadd.f32 %v1851, %v2031
        %v2097 = vadd.f32 %v1852, %v2033
        %v2098 = vld [vmem:[#allocation8 + $0x6] sm:$0x1]
        %v2099 = vlaneseq
        %v2100 = vshrl.u32 %v2099, 7
        %v2101 = vsub.s32 0, %v2100
        %v2102 = vrot.slane %v2098, %v2101
        %v2103 = vmul.f32 %v930, %v2102
        %v2104 = vmul.f32 %v931, %v2102
        %v2105 = vmul.f32 %v933, %v2102
        %v2106 = vmul.f32 %v934, %v2102
        %v2107 = vmul.f32 %v936, %v2102
        %v2108 = vmul.f32 %v937, %v2102
        %v2109 = vmul.f32 %v939, %v2102
        %v2110 = vmul.f32 %v940, %v2102
        %v2111 = vmul.f32 %v942, %v2102
        %v2112 = vmul.f32 %v943, %v2102
        %v2113 = vmul.f32 %v945, %v2102
        %v2114 = vmul.f32 %v946, %v2102
        %v2115 = vmul.f32 %v948, %v2102
        %v2116 = vmul.f32 %v949, %v2102
        %v2117 = vmul.f32 %v951, %v2102
        %v2118 = vmul.f32 %v952, %v2102
        %v2119 = vmul.f32 %v954, %v2102
        %v2120 = vmul.f32 %v955, %v2102
        %v2121 = vmul.f32 %v957, %v2102
        %v2122 = vmul.f32 %v958, %v2102
        %v2123 = vmul.f32 %v960, %v2102
        %v2124 = vmul.f32 %v961, %v2102
        %v2125 = vmul.f32 %v963, %v2102
        %v2126 = vmul.f32 %v964, %v2102
        %v2127 = vmul.f32 %v966, %v2102
        %v2128 = vmul.f32 %v967, %v2102
        %v2129 = vmul.f32 %v969, %v2102
        %v2130 = vmul.f32 %v970, %v2102
        %v2131 = vmul.f32 %v972, %v2102
        %v2132 = vmul.f32 %v973, %v2102
        %v2133 = vmul.f32 %v975, %v2102
        %v2134 = vmul.f32 %v976, %v2102
        %v2135 = vadd.f32 %v2066, %v2103
        %v2136 = vadd.f32 %v2067, %v2104
        %v2137 = vadd.f32 %v2068, %v2105
        %v2138 = vadd.f32 %v2069, %v2106
        %v2139 = vadd.f32 %v2070, %v2107
        %v2140 = vadd.f32 %v2071, %v2108
        %v2141 = vadd.f32 %v2072, %v2109
        %v2142 = vadd.f32 %v2073, %v2110
        %v2143 = vadd.f32 %v2074, %v2111
        %v2144 = vadd.f32 %v2075, %v2112
        %v2145 = vadd.f32 %v2076, %v2113
        %v2146 = vadd.f32 %v2077, %v2114
        %v2147 = vadd.f32 %v2078, %v2115
        %v2148 = vadd.f32 %v2079, %v2116
        %v2149 = vadd.f32 %v2080, %v2117
        %v2150 = vadd.f32 %v2081, %v2118
        %v2151 = vadd.f32 %v2082, %v2119
        %v2152 = vadd.f32 %v2083, %v2120
        %v2153 = vadd.f32 %v2084, %v2121
        %v2154 = vadd.f32 %v2085, %v2122
        %v2155 = vadd.f32 %v2086, %v2123
        %v2156 = vadd.f32 %v2087, %v2124
        %v2157 = vadd.f32 %v2088, %v2125
        %v2158 = vadd.f32 %v2089, %v2126
        %v2159 = vadd.f32 %v2090, %v2127
        %v2160 = vadd.f32 %v2091, %v2128
        %v2161 = vadd.f32 %v2092, %v2129
        %v2162 = vadd.f32 %v2093, %v2130
        %v2163 = vadd.f32 %v2094, %v2131
        %v2164 = vadd.f32 %v2095, %v2132
        %v2165 = vadd.f32 %v2096, %v2133
        %v2166 = vadd.f32 %v2097, %v2134
        %v2167 = vld [vmem:[#allocation8 + $0x7] sm:$0x1]
        %v2168 = vlaneseq
        %v2169 = vshrl.u32 %v2168, 7
        %v2170 = vsub.s32 0, %v2169
        %v2171 = vrot.slane %v2167, %v2170
        %v2172 = vmul.f32 %v930, %v2171
        %v2173 = vmul.f32 %v931, %v2171
        %v2174 = vmul.f32 %v932, %v2171
        %v2175 = vmul.f32 %v933, %v2171
        %v2176 = vmul.f32 %v934, %v2171
        %v2177 = vmul.f32 %v935, %v2171
        %v2178 = vmul.f32 %v936, %v2171
        %v2179 = vmul.f32 %v937, %v2171
        %v2180 = vmul.f32 %v938, %v2171
        %v2181 = vmul.f32 %v939, %v2171
        %v2182 = vmul.f32 %v940, %v2171
        %v2183 = vmul.f32 %v941, %v2171
        %v2184 = vmul.f32 %v942, %v2171
        %v2185 = vmul.f32 %v943, %v2171
        %v2186 = vmul.f32 %v944, %v2171
        %v2187 = vmul.f32 %v945, %v2171
        %v2188 = vmul.f32 %v946, %v2171
        %v2189 = vmul.f32 %v947, %v2171
        %v2190 = vmul.f32 %v948, %v2171
        %v2191 = vmul.f32 %v949, %v2171
        %v2192 = vmul.f32 %v950, %v2171
        %v2193 = vmul.f32 %v951, %v2171
        %v2194 = vmul.f32 %v952, %v2171
        %v2195 = vmul.f32 %v953, %v2171
        %v2196 = vmul.f32 %v954, %v2171
        %v2197 = vmul.f32 %v955, %v2171
        %v2198 = vmul.f32 %v956, %v2171
        %v2199 = vmul.f32 %v957, %v2171
        %v2200 = vmul.f32 %v958, %v2171
        %v2201 = vmul.f32 %v959, %v2171
        %v2202 = vmul.f32 %v960, %v2171
        %v2203 = vmul.f32 %v961, %v2171
        %v2204 = vmul.f32 %v962, %v2171
        %v2205 = vmul.f32 %v963, %v2171
        %v2206 = vmul.f32 %v964, %v2171
        %v2207 = vmul.f32 %v965, %v2171
        %v2208 = vmul.f32 %v966, %v2171
        %v2209 = vmul.f32 %v967, %v2171
        %v2210 = vmul.f32 %v968, %v2171
        %v2211 = vmul.f32 %v969, %v2171
        %v2212 = vmul.f32 %v970, %v2171
        %v2213 = vmul.f32 %v971, %v2171
        %v2214 = vmul.f32 %v972, %v2171
        %v2215 = vmul.f32 %v973, %v2171
        %v2216 = vmul.f32 %v974, %v2171
        %v2217 = vmul.f32 %v975, %v2171
        %v2218 = vmul.f32 %v976, %v2171
        %v2219 = vmul.f32 %v977, %v2171
        %v2268 = vrot.slane %v2172, 1
        %v2269 = vrot.slane %v2173, 1
        %v2270 = vsel %vm1148, %v2268, %v2269
        %v2271 = vrot.slane %v2174, 1
        %v2272 = vsel %vm1148, %v2269, %v2271
        %v2273 = vrot.slane %v2175, 1
        %v2274 = vrot.slane %v2176, 1
        %v2275 = vsel %vm1148, %v2273, %v2274
        %v2276 = vrot.slane %v2177, 1
        %v2277 = vsel %vm1148, %v2274, %v2276
        %v2278 = vrot.slane %v2178, 1
        %v2279 = vrot.slane %v2179, 1
        %v2280 = vsel %vm1148, %v2278, %v2279
        %v2281 = vrot.slane %v2180, 1
        %v2282 = vsel %vm1148, %v2279, %v2281
        %v2283 = vrot.slane %v2181, 1
        %v2284 = vrot.slane %v2182, 1
        %v2285 = vsel %vm1148, %v2283, %v2284
        %v2286 = vrot.slane %v2183, 1
        %v2287 = vsel %vm1148, %v2284, %v2286
        %v2288 = vrot.slane %v2184, 1
        %v2289 = vrot.slane %v2185, 1
        %v2290 = vsel %vm1148, %v2288, %v2289
        %v2291 = vrot.slane %v2186, 1
        %v2292 = vsel %vm1148, %v2289, %v2291
        %v2293 = vrot.slane %v2187, 1
        %v2294 = vrot.slane %v2188, 1
        %v2295 = vsel %vm1148, %v2293, %v2294
        %v2296 = vrot.slane %v2189, 1
        %v2297 = vsel %vm1148, %v2294, %v2296
        %v2298 = vrot.slane %v2190, 1
        %v2299 = vrot.slane %v2191, 1
        %v2300 = vsel %vm1148, %v2298, %v2299
        %v2301 = vrot.slane %v2192, 1
        %v2302 = vsel %vm1148, %v2299, %v2301
        %v2303 = vrot.slane %v2193, 1
        %v2304 = vrot.slane %v2194, 1
        %v2305 = vsel %vm1148, %v2303, %v2304
        %v2306 = vrot.slane %v2195, 1
        %v2307 = vsel %vm1148, %v2304, %v2306
        %v2308 = vrot.slane %v2196, 1
        %v2309 = vrot.slane %v2197, 1
        %v2310 = vsel %vm1148, %v2308, %v2309
        %v2311 = vrot.slane %v2198, 1
        %v2312 = vsel %vm1148, %v2309, %v2311
        %v2313 = vrot.slane %v2199, 1
        %v2314 = vrot.slane %v2200, 1
        %v2315 = vsel %vm1148, %v2313, %v2314
        %v2316 = vrot.slane %v2201, 1
        %v2317 = vsel %vm1148, %v2314, %v2316
        %v2318 = vrot.slane %v2202, 1
        %v2319 = vrot.slane %v2203, 1
        %v2320 = vsel %vm1148, %v2318, %v2319
        %v2321 = vrot.slane %v2204, 1
        %v2322 = vsel %vm1148, %v2319, %v2321
        %v2323 = vrot.slane %v2205, 1
        %v2324 = vrot.slane %v2206, 1
        %v2325 = vsel %vm1148, %v2323, %v2324
        %v2326 = vrot.slane %v2207, 1
        %v2327 = vsel %vm1148, %v2324, %v2326
        %v2328 = vrot.slane %v2208, 1
        %v2329 = vrot.slane %v2209, 1
        %v2330 = vsel %vm1148, %v2328, %v2329
        %v2331 = vrot.slane %v2210, 1
        %v2332 = vsel %vm1148, %v2329, %v2331
        %v2333 = vrot.slane %v2211, 1
        %v2334 = vrot.slane %v2212, 1
        %v2335 = vsel %vm1148, %v2333, %v2334
        %v2336 = vrot.slane %v2213, 1
        %v2337 = vsel %vm1148, %v2334, %v2336
        %v2338 = vrot.slane %v2214, 1
        %v2339 = vrot.slane %v2215, 1
        %v2340 = vsel %vm1148, %v2338, %v2339
        %v2341 = vrot.slane %v2216, 1
        %v2342 = vsel %vm1148, %v2339, %v2341
        %v2343 = vrot.slane %v2217, 1
        %v2344 = vrot.slane %v2218, 1
        %v2345 = vsel %vm1148, %v2343, %v2344
        %v2346 = vrot.slane %v2219, 1
        %v2347 = vsel %vm1148, %v2344, %v2346
        %v2380 = vadd.f32 %v2135, %v2270
        %v2381 = vadd.f32 %v2136, %v2272
        %v2382 = vadd.f32 %v2137, %v2275
        %v2383 = vadd.f32 %v2138, %v2277
        %v2384 = vadd.f32 %v2139, %v2280
        %v2385 = vadd.f32 %v2140, %v2282
        %v2386 = vadd.f32 %v2141, %v2285
        %v2387 = vadd.f32 %v2142, %v2287
        %v2388 = vadd.f32 %v2143, %v2290
        %v2389 = vadd.f32 %v2144, %v2292
        %v2390 = vadd.f32 %v2145, %v2295
        %v2391 = vadd.f32 %v2146, %v2297
        %v2392 = vadd.f32 %v2147, %v2300
        %v2393 = vadd.f32 %v2148, %v2302
        %v2394 = vadd.f32 %v2149, %v2305
        %v2395 = vadd.f32 %v2150, %v2307
        %v2396 = vadd.f32 %v2151, %v2310
        %v2397 = vadd.f32 %v2152, %v2312
        %v2398 = vadd.f32 %v2153, %v2315
        %v2399 = vadd.f32 %v2154, %v2317
        %v2400 = vadd.f32 %v2155, %v2320
        %v2401 = vadd.f32 %v2156, %v2322
        %v2402 = vadd.f32 %v2157, %v2325
        %v2403 = vadd.f32 %v2158, %v2327
        %v2404 = vadd.f32 %v2159, %v2330
        %v2405 = vadd.f32 %v2160, %v2332
        %v2406 = vadd.f32 %v2161, %v2335
        %v2407 = vadd.f32 %v2162, %v2337
        %v2408 = vadd.f32 %v2163, %v2340
        %v2409 = vadd.f32 %v2164, %v2342
        %v2410 = vadd.f32 %v2165, %v2345
        %v2411 = vadd.f32 %v2166, %v2347
        %v2412 = vld [vmem:[#allocation8 + $0x8] sm:$0x1]
        %v2413 = vlaneseq
        %v2414 = vshrl.u32 %v2413, 7
        %v2415 = vsub.s32 0, %v2414
        %v2416 = vrot.slane %v2412, %v2415
        %v2417 = vmul.f32 %v930, %v2416
        %v2418 = vmul.f32 %v931, %v2416
        %v2419 = vmul.f32 %v932, %v2416
        %v2420 = vmul.f32 %v933, %v2416
        %v2421 = vmul.f32 %v934, %v2416
        %v2422 = vmul.f32 %v935, %v2416
        %v2423 = vmul.f32 %v936, %v2416
        %v2424 = vmul.f32 %v937, %v2416
        %v2425 = vmul.f32 %v938, %v2416
        %v2426 = vmul.f32 %v939, %v2416
        %v2427 = vmul.f32 %v940, %v2416
        %v2428 = vmul.f32 %v941, %v2416
        %v2429 = vmul.f32 %v942, %v2416
        %v2430 = vmul.f32 %v943, %v2416
        %v2431 = vmul.f32 %v944, %v2416
        %v2432 = vmul.f32 %v945, %v2416
        %v2433 = vmul.f32 %v946, %v2416
        %v2434 = vmul.f32 %v947, %v2416
        %v2435 = vmul.f32 %v948, %v2416
        %v2436 = vmul.f32 %v949, %v2416
        %v2437 = vmul.f32 %v950, %v2416
        %v2438 = vmul.f32 %v951, %v2416
        %v2439 = vmul.f32 %v952, %v2416
        %v2440 = vmul.f32 %v953, %v2416
        %v2441 = vmul.f32 %v954, %v2416
        %v2442 = vmul.f32 %v955, %v2416
        %v2443 = vmul.f32 %v956, %v2416
        %v2444 = vmul.f32 %v957, %v2416
        %v2445 = vmul.f32 %v958, %v2416
        %v2446 = vmul.f32 %v959, %v2416
        %v2447 = vmul.f32 %v960, %v2416
        %v2448 = vmul.f32 %v961, %v2416
        %v2449 = vmul.f32 %v962, %v2416
        %v2450 = vmul.f32 %v963, %v2416
        %v2451 = vmul.f32 %v964, %v2416
        %v2452 = vmul.f32 %v965, %v2416
        %v2453 = vmul.f32 %v966, %v2416
        %v2454 = vmul.f32 %v967, %v2416
        %v2455 = vmul.f32 %v968, %v2416
        %v2456 = vmul.f32 %v969, %v2416
        %v2457 = vmul.f32 %v970, %v2416
        %v2458 = vmul.f32 %v971, %v2416
        %v2459 = vmul.f32 %v972, %v2416
        %v2460 = vmul.f32 %v973, %v2416
        %v2461 = vmul.f32 %v974, %v2416
        %v2462 = vmul.f32 %v975, %v2416
        %v2463 = vmul.f32 %v976, %v2416
        %v2464 = vmul.f32 %v977, %v2416
        %v2513 = vrot.slane %v2417, 2
        %v2514 = vrot.slane %v2418, 2
        %v2515 = vsel %vm1394, %v2513, %v2514
        %v2516 = vrot.slane %v2419, 2
        %v2517 = vsel %vm1394, %v2514, %v2516
        %v2518 = vrot.slane %v2420, 2
        %v2519 = vrot.slane %v2421, 2
        %v2520 = vsel %vm1394, %v2518, %v2519
        %v2521 = vrot.slane %v2422, 2
        %v2522 = vsel %vm1394, %v2519, %v2521
        %v2523 = vrot.slane %v2423, 2
        %v2524 = vrot.slane %v2424, 2
        %v2525 = vsel %vm1394, %v2523, %v2524
        %v2526 = vrot.slane %v2425, 2
        %v2527 = vsel %vm1394, %v2524, %v2526
        %v2528 = vrot.slane %v2426, 2
        %v2529 = vrot.slane %v2427, 2
        %v2530 = vsel %vm1394, %v2528, %v2529
        %v2531 = vrot.slane %v2428, 2
        %v2532 = vsel %vm1394, %v2529, %v2531
        %v2533 = vrot.slane %v2429, 2
        %v2534 = vrot.slane %v2430, 2
        %v2535 = vsel %vm1394, %v2533, %v2534
        %v2536 = vrot.slane %v2431, 2
        %v2537 = vsel %vm1394, %v2534, %v2536
        %v2538 = vrot.slane %v2432, 2
        %v2539 = vrot.slane %v2433, 2
        %v2540 = vsel %vm1394, %v2538, %v2539
        %v2541 = vrot.slane %v2434, 2
        %v2542 = vsel %vm1394, %v2539, %v2541
        %v2543 = vrot.slane %v2435, 2
        %v2544 = vrot.slane %v2436, 2
        %v2545 = vsel %vm1394, %v2543, %v2544
        %v2546 = vrot.slane %v2437, 2
        %v2547 = vsel %vm1394, %v2544, %v2546
        %v2548 = vrot.slane %v2438, 2
        %v2549 = vrot.slane %v2439, 2
        %v2550 = vsel %vm1394, %v2548, %v2549
        %v2551 = vrot.slane %v2440, 2
        %v2552 = vsel %vm1394, %v2549, %v2551
        %v2553 = vrot.slane %v2441, 2
        %v2554 = vrot.slane %v2442, 2
        %v2555 = vsel %vm1394, %v2553, %v2554
        %v2556 = vrot.slane %v2443, 2
        %v2557 = vsel %vm1394, %v2554, %v2556
        %v2558 = vrot.slane %v2444, 2
        %v2559 = vrot.slane %v2445, 2
        %v2560 = vsel %vm1394, %v2558, %v2559
        %v2561 = vrot.slane %v2446, 2
        %v2562 = vsel %vm1394, %v2559, %v2561
        %v2563 = vrot.slane %v2447, 2
        %v2564 = vrot.slane %v2448, 2
        %v2565 = vsel %vm1394, %v2563, %v2564
        %v2566 = vrot.slane %v2449, 2
        %v2567 = vsel %vm1394, %v2564, %v2566
        %v2568 = vrot.slane %v2450, 2
        %v2569 = vrot.slane %v2451, 2
        %v2570 = vsel %vm1394, %v2568, %v2569
        %v2571 = vrot.slane %v2452, 2
        %v2572 = vsel %vm1394, %v2569, %v2571
        %v2573 = vrot.slane %v2453, 2
        %v2574 = vrot.slane %v2454, 2
        %v2575 = vsel %vm1394, %v2573, %v2574
        %v2576 = vrot.slane %v2455, 2
        %v2577 = vsel %vm1394, %v2574, %v2576
        %v2578 = vrot.slane %v2456, 2
        %v2579 = vrot.slane %v2457, 2
        %v2580 = vsel %vm1394, %v2578, %v2579
        %v2581 = vrot.slane %v2458, 2
        %v2582 = vsel %vm1394, %v2579, %v2581
        %v2583 = vrot.slane %v2459, 2
        %v2584 = vrot.slane %v2460, 2
        %v2585 = vsel %vm1394, %v2583, %v2584
        %v2586 = vrot.slane %v2461, 2
        %v2587 = vsel %vm1394, %v2584, %v2586
        %v2588 = vrot.slane %v2462, 2
        %v2589 = vrot.slane %v2463, 2
        %v2590 = vsel %vm1394, %v2588, %v2589
        %v2591 = vrot.slane %v2464, 2
        %v2592 = vsel %vm1394, %v2589, %v2591
        %v2625 = vadd.f32 %v2380, %v2515
        %v2626 = vadd.f32 %v2381, %v2517
        %v2627 = vadd.f32 %v2382, %v2520
        %v2628 = vadd.f32 %v2383, %v2522
        %v2629 = vadd.f32 %v2384, %v2525
        %v2630 = vadd.f32 %v2385, %v2527
        %v2631 = vadd.f32 %v2386, %v2530
        %v2632 = vadd.f32 %v2387, %v2532
        %v2633 = vadd.f32 %v2388, %v2535
        %v2634 = vadd.f32 %v2389, %v2537
        %v2635 = vadd.f32 %v2390, %v2540
        %v2636 = vadd.f32 %v2391, %v2542
        %v2637 = vadd.f32 %v2392, %v2545
        %v2638 = vadd.f32 %v2393, %v2547
        %v2639 = vadd.f32 %v2394, %v2550
        %v2640 = vadd.f32 %v2395, %v2552
        %v2641 = vadd.f32 %v2396, %v2555
        %v2642 = vadd.f32 %v2397, %v2557
        %v2643 = vadd.f32 %v2398, %v2560
        %v2644 = vadd.f32 %v2399, %v2562
        %v2645 = vadd.f32 %v2400, %v2565
        %v2646 = vadd.f32 %v2401, %v2567
        %v2647 = vadd.f32 %v2402, %v2570
        %v2648 = vadd.f32 %v2403, %v2572
        %v2649 = vadd.f32 %v2404, %v2575
        %v2650 = vadd.f32 %v2405, %v2577
        %v2651 = vadd.f32 %v2406, %v2580
        %v2652 = vadd.f32 %v2407, %v2582
        %v2653 = vadd.f32 %v2408, %v2585
        %v2654 = vadd.f32 %v2409, %v2587
        %v2655 = vadd.f32 %v2410, %v2590
        %v2656 = vadd.f32 %v2411, %v2592
        %v2657 = vld [vmem:[%s5] sm:$0x1]
        %v2659 = vlaneseq
        %v2660 = vshrl.u32 %v2659, 7
        %v2661 = vsub.s32 0, %v2660
        %v2662 = vrot.slane %v2657, %v2661
        %v2664 = vmul.f32 %v2625, %v2662
        %v2665 = vmul.f32 %v2626, %v2662
        %v2666 = vmul.f32 %v2627, %v2662
        %v2667 = vmul.f32 %v2628, %v2662
        %v2668 = vmul.f32 %v2629, %v2662
        %v2669 = vmul.f32 %v2630, %v2662
        %v2670 = vmul.f32 %v2631, %v2662
        %v2671 = vmul.f32 %v2632, %v2662
        %v2672 = vmul.f32 %v2633, %v2662
        %v2673 = vmul.f32 %v2634, %v2662
        %v2674 = vmul.f32 %v2635, %v2662
        %v2675 = vmul.f32 %v2636, %v2662
        %v2676 = vmul.f32 %v2637, %v2662
        %v2677 = vmul.f32 %v2638, %v2662
        %v2678 = vmul.f32 %v2639, %v2662
        %v2679 = vmul.f32 %v2640, %v2662
        %v2680 = vmul.f32 %v2641, %v2662
        %v2681 = vmul.f32 %v2642, %v2662
        %v2682 = vmul.f32 %v2643, %v2662
        %v2683 = vmul.f32 %v2644, %v2662
        %v2684 = vmul.f32 %v2645, %v2662
        %v2685 = vmul.f32 %v2646, %v2662
        %v2686 = vmul.f32 %v2647, %v2662
        %v2687 = vmul.f32 %v2648, %v2662
        %v2688 = vmul.f32 %v2649, %v2662
        %v2689 = vmul.f32 %v2650, %v2662
        %v2690 = vmul.f32 %v2651, %v2662
        %v2691 = vmul.f32 %v2652, %v2662
        %v2692 = vmul.f32 %v2653, %v2662
        %v2693 = vmul.f32 %v2654, %v2662
        %v2694 = vmul.f32 %v2655, %v2662
        %v2695 = vmul.f32 %v2656, %v2662
        %v2696 = vld [vmem:[%s6] sm:$0x1]
        %v2698 = vlaneseq
        %v2699 = vshrl.u32 %v2698, 7
        %v2700 = vsub.s32 0, %v2699
        %v2701 = vrot.slane %v2696, %v2700
        %v2703 = vadd.f32 %v2664, %v2701
        %v2704 = vadd.f32 %v2665, %v2701
        %v2705 = vadd.f32 %v2666, %v2701
        %v2706 = vadd.f32 %v2667, %v2701
        %v2707 = vadd.f32 %v2668, %v2701
        %v2708 = vadd.f32 %v2669, %v2701
        %v2709 = vadd.f32 %v2670, %v2701
        %v2710 = vadd.f32 %v2671, %v2701
        %v2711 = vadd.f32 %v2672, %v2701
        %v2712 = vadd.f32 %v2673, %v2701
        %v2713 = vadd.f32 %v2674, %v2701
        %v2714 = vadd.f32 %v2675, %v2701
        %v2715 = vadd.f32 %v2676, %v2701
        %v2716 = vadd.f32 %v2677, %v2701
        %v2717 = vadd.f32 %v2678, %v2701
        %v2718 = vadd.f32 %v2679, %v2701
        %v2719 = vadd.f32 %v2680, %v2701
        %v2720 = vadd.f32 %v2681, %v2701
        %v2721 = vadd.f32 %v2682, %v2701
        %v2722 = vadd.f32 %v2683, %v2701
        %v2723 = vadd.f32 %v2684, %v2701
        %v2724 = vadd.f32 %v2685, %v2701
        %v2725 = vadd.f32 %v2686, %v2701
        %v2726 = vadd.f32 %v2687, %v2701
        %v2727 = vadd.f32 %v2688, %v2701
        %v2728 = vadd.f32 %v2689, %v2701
        %v2729 = vadd.f32 %v2690, %v2701
        %v2730 = vadd.f32 %v2691, %v2701
        %v2731 = vadd.f32 %v2692, %v2701
        %v2732 = vadd.f32 %v2693, %v2701
        %v2733 = vadd.f32 %v2694, %v2701
        %v2734 = vadd.f32 %v2695, %v2701
        %v2735 = vmax.f32 %v2703, 0.0
        %v2736 = vmax.f32 %v2704, 0.0
        %v2737 = vmax.f32 %v2705, 0.0
        %v2738 = vmax.f32 %v2706, 0.0
        %v2739 = vmax.f32 %v2707, 0.0
        %v2740 = vmax.f32 %v2708, 0.0
        %v2741 = vmax.f32 %v2709, 0.0
        %v2742 = vmax.f32 %v2710, 0.0
        %v2743 = vmax.f32 %v2711, 0.0
        %v2744 = vmax.f32 %v2712, 0.0
        %v2745 = vmax.f32 %v2713, 0.0
        %v2746 = vmax.f32 %v2714, 0.0
        %v2747 = vmax.f32 %v2715, 0.0
        %v2748 = vmax.f32 %v2716, 0.0
        %v2749 = vmax.f32 %v2717, 0.0
        %v2750 = vmax.f32 %v2718, 0.0
        %v2751 = vmax.f32 %v2719, 0.0
        %v2752 = vmax.f32 %v2720, 0.0
        %v2753 = vmax.f32 %v2721, 0.0
        %v2754 = vmax.f32 %v2722, 0.0
        %v2755 = vmax.f32 %v2723, 0.0
        %v2756 = vmax.f32 %v2724, 0.0
        %v2757 = vmax.f32 %v2725, 0.0
        %v2758 = vmax.f32 %v2726, 0.0
        %v2759 = vmax.f32 %v2727, 0.0
        %v2760 = vmax.f32 %v2728, 0.0
        %v2761 = vmax.f32 %v2729, 0.0
        %v2762 = vmax.f32 %v2730, 0.0
        %v2763 = vmax.f32 %v2731, 0.0
        %v2764 = vmax.f32 %v2732, 0.0
        %v2765 = vmax.f32 %v2733, 0.0
        %v2766 = vmax.f32 %v2734, 0.0
        %v2767 = vmin.f32 %v2735, 6.0
        %v2768 = vmin.f32 %v2736, 6.0
        %v2769 = vmin.f32 %v2737, 6.0
        %v2770 = vmin.f32 %v2738, 6.0
        %v2771 = vmin.f32 %v2739, 6.0
        %v2772 = vmin.f32 %v2740, 6.0
        %v2773 = vmin.f32 %v2741, 6.0
        %v2774 = vmin.f32 %v2742, 6.0
        %v2775 = vmin.f32 %v2743, 6.0
        %v2776 = vmin.f32 %v2744, 6.0
        %v2777 = vmin.f32 %v2745, 6.0
        %v2778 = vmin.f32 %v2746, 6.0
        %v2779 = vmin.f32 %v2747, 6.0
        %v2780 = vmin.f32 %v2748, 6.0
        %v2781 = vmin.f32 %v2749, 6.0
        %v2782 = vmin.f32 %v2750, 6.0
        %v2783 = vmin.f32 %v2751, 6.0
        %v2784 = vmin.f32 %v2752, 6.0
        %v2785 = vmin.f32 %v2753, 6.0
        %v2786 = vmin.f32 %v2754, 6.0
        %v2787 = vmin.f32 %v2755, 6.0
        %v2788 = vmin.f32 %v2756, 6.0
        %v2789 = vmin.f32 %v2757, 6.0
        %v2790 = vmin.f32 %v2758, 6.0
        %v2791 = vmin.f32 %v2759, 6.0
        %v2792 = vmin.f32 %v2760, 6.0
        %v2793 = vmin.f32 %v2761, 6.0
        %v2794 = vmin.f32 %v2762, 6.0
        %v2795 = vmin.f32 %v2763, 6.0
        %v2796 = vmin.f32 %v2764, 6.0
        %v2797 = vmin.f32 %v2765, 6.0
        %v2798 = vmin.f32 %v2766, 6.0
        %v2799 = vld [vmem:[#allocation9] sm:$0xff]
        %v2800 = vld [vmem:[#allocation9 + $0x8] sm:$0xff]
        %v2801 = vld [vmem:[#allocation9 + $0x10] sm:$0xff]
        %v2802 = vld [vmem:[#allocation9 + $0x18] sm:$0xff]
        %v2803 = vld [vmem:[#allocation9 + $0x20] sm:$0xff]
        %v2804 = vld [vmem:[#allocation9 + $0x28] sm:$0xff]
        %v2805 = vld [vmem:[#allocation9 + $0x30] sm:$0xff]
        %v2806 = vld [vmem:[#allocation9 + $0x38] sm:$0xff]
        %v2807 = vld [vmem:[#allocation9 + $0x40] sm:$0xff]
        %v2808 = vld [vmem:[#allocation9 + $0x48] sm:$0xff]
        %v2809 = vld [vmem:[#allocation9 + $0x50] sm:$0xff]
        %v2810 = vld [vmem:[#allocation9 + $0x58] sm:$0xff]
        %v2811 = vld [vmem:[#allocation9 + $0x60] sm:$0xff]
        %v2812 = vld [vmem:[#allocation9 + $0x68] sm:$0xff]
        %v2813 = vld [vmem:[#allocation9 + $0x70] sm:$0xff]
        %v2814 = vld [vmem:[#allocation9 + $0x78] sm:$0xff]
        %2815 = vmatprep.subr.mxu0 0.0
        %2816 = vmatpush1.msra.mxu0 %v2814
        %2817 = vmatprep.subr.mxu0 0.0
        %2818 = vmatpush1.msra.mxu0 %v2813
        %2819 = vmatprep.subr.mxu0 0.0
        %2820 = vmatpush1.msra.mxu0 %v2812
        %2821 = vmatprep.subr.mxu0 0.0
        %2822 = vmatpush1.msra.mxu0 %v2811
        %2823 = vmatprep.subr.mxu0 0.0
        %2824 = vmatpush1.msra.mxu0 %v2810
        %2825 = vmatprep.subr.mxu0 0.0
        %2826 = vmatpush1.msra.mxu0 %v2809
        %2827 = vmatprep.subr.mxu0 0.0
        %2828 = vmatpush1.msra.mxu0 %v2808
        %2829 = vmatprep.subr.mxu0 0.0
        %2830 = vmatpush1.msra.mxu0 %v2807
        %2831 = vmatprep.subr.mxu0 0.0
        %2832 = vmatpush1.msra.mxu0 %v2806
        %2833 = vmatprep.subr.mxu0 0.0
        %2834 = vmatpush1.msra.mxu0 %v2805
        %2835 = vmatprep.subr.mxu0 0.0
        %2836 = vmatpush1.msra.mxu0 %v2804
        %2837 = vmatprep.subr.mxu0 0.0
        %2838 = vmatpush1.msra.mxu0 %v2803
        %2839 = vmatprep.subr.mxu0 0.0
        %2840 = vmatpush1.msra.mxu0 %v2802
        %2841 = vmatprep.subr.mxu0 0.0
        %2842 = vmatpush1.msra.mxu0 %v2801
        %2843 = vmatprep.subr.mxu0 0.0
        %2844 = vmatpush1.msra.mxu0 %v2800
        %2845 = vmatprep.subr.mxu0 0.0
        %2846 = vmatpush1.msra.mxu0 %v2799
        %2847 = vmatprep.subr.mxu0 0.0
        %2848 = vmatpush2.msra.mxu0 0.0
        %2849 = vmatprep.subr.mxu0 0.0
        %2850 = vmatpush2.msra.mxu0 0.0
        %2851 = vmatprep.subr.mxu0 0.0
        %2852 = vmatpush2.msra.mxu0 0.0
        %2853 = vmatprep.subr.mxu0 0.0
        %2854 = vmatpush2.msra.mxu0 0.0
        %2855 = vmatprep.subr.mxu0 0.0
        %2856 = vmatpush2.msra.mxu0 0.0
        %2857 = vmatprep.subr.mxu0 0.0
        %2858 = vmatpush2.msra.mxu0 0.0
        %2859 = vmatprep.subr.mxu0 0.0
        %2860 = vmatpush2.msra.mxu0 0.0
        %2861 = vmatprep.subr.mxu0 0.0
        %2862 = vmatpush2.msra.mxu0 0.0
        %2863 = vmatprep.subr.mxu0 0.0
        %2864 = vmatpush2.msra.mxu0 0.0
        %2865 = vmatprep.subr.mxu0 0.0
        %2866 = vmatpush2.msra.mxu0 0.0
        %2867 = vmatprep.subr.mxu0 0.0
        %2868 = vmatpush2.msra.mxu0 0.0
        %2869 = vmatprep.subr.mxu0 0.0
        %2870 = vmatpush2.msra.mxu0 0.0
        %2871 = vmatprep.subr.mxu0 0.0
        %2872 = vmatpush2.msra.mxu0 0.0
        %2873 = vmatprep.subr.mxu0 0.0
        %2874 = vmatpush2.msra.mxu0 0.0
        %2875 = vmatprep.subr.mxu0 0.0
        %2876 = vmatpush2.msra.mxu0 0.0
        %2877 = vmatprep.subr.mxu0 0.0
        %2878 = vmatpush2.msra.mxu0 0.0
        %2879 = vmatprep.mubr.f32.mxu0 0.0
        %2880 = vmatmul.mubr.f32.gmra.mxu0 %v2767
        %v2881 = vpop.f32.mrf.mxu0
        %v2882 = vadd.f32 0.0, %v2881
        %v2883 = vpop.f32.mrf.mxu0
        %2884 = vmatprep.mubr.f32.mxu0 0.0
        %2885 = vmatmul.mubr.f32.gmra.mxu0 %v2768
        %v2886 = vpop.f32.mrf.mxu0
        %v2887 = vadd.f32 0.0, %v2886
        %v2888 = vpop.f32.mrf.mxu0
        %2889 = vmatprep.mubr.f32.mxu0 0.0
        %2890 = vmatmul.mubr.f32.gmra.mxu0 %v2769
        %v2891 = vpop.f32.mrf.mxu0
        %v2892 = vadd.f32 0.0, %v2891
        %v2893 = vpop.f32.mrf.mxu0
        %2894 = vmatprep.mubr.f32.mxu0 0.0
        %2895 = vmatmul.mubr.f32.gmra.mxu0 %v2770
        %v2896 = vpop.f32.mrf.mxu0
        %v2897 = vadd.f32 0.0, %v2896
        %v2898 = vpop.f32.mrf.mxu0
        %2899 = vmatprep.mubr.f32.mxu0 0.0
        %2900 = vmatmul.mubr.f32.gmra.mxu0 %v2771
        %v2901 = vpop.f32.mrf.mxu0
        %v2902 = vadd.f32 0.0, %v2901
        %v2903 = vpop.f32.mrf.mxu0
        %2904 = vmatprep.mubr.f32.mxu0 0.0
        %2905 = vmatmul.mubr.f32.gmra.mxu0 %v2772
        %v2906 = vpop.f32.mrf.mxu0
        %v2907 = vadd.f32 0.0, %v2906
        %v2908 = vpop.f32.mrf.mxu0
        %2909 = vmatprep.mubr.f32.mxu0 0.0
        %2910 = vmatmul.mubr.f32.gmra.mxu0 %v2773
        %v2911 = vpop.f32.mrf.mxu0
        %v2912 = vadd.f32 0.0, %v2911
        %v2913 = vpop.f32.mrf.mxu0
        %2914 = vmatprep.mubr.f32.mxu0 0.0
        %2915 = vmatmul.mubr.f32.gmra.mxu0 %v2774
        %v2916 = vpop.f32.mrf.mxu0
        %v2917 = vadd.f32 0.0, %v2916
        %v2918 = vpop.f32.mrf.mxu0
        %2919 = vmatprep.mubr.f32.mxu0 0.0
        %2920 = vmatmul.mubr.f32.gmra.mxu0 %v2775
        %v2921 = vpop.f32.mrf.mxu0
        %v2922 = vadd.f32 0.0, %v2921
        %v2923 = vpop.f32.mrf.mxu0
        %2924 = vmatprep.mubr.f32.mxu0 0.0
        %2925 = vmatmul.mubr.f32.gmra.mxu0 %v2776
        %v2926 = vpop.f32.mrf.mxu0
        %v2927 = vadd.f32 0.0, %v2926
        %v2928 = vpop.f32.mrf.mxu0
        %2929 = vmatprep.mubr.f32.mxu0 0.0
        %2930 = vmatmul.mubr.f32.gmra.mxu0 %v2777
        %v2931 = vpop.f32.mrf.mxu0
        %v2932 = vadd.f32 0.0, %v2931
        %v2933 = vpop.f32.mrf.mxu0
        %2934 = vmatprep.mubr.f32.mxu0 0.0
        %2935 = vmatmul.mubr.f32.gmra.mxu0 %v2778
        %v2936 = vpop.f32.mrf.mxu0
        %v2937 = vadd.f32 0.0, %v2936
        %v2938 = vpop.f32.mrf.mxu0
        %2939 = vmatprep.mubr.f32.mxu0 0.0
        %2940 = vmatmul.mubr.f32.gmra.mxu0 %v2779
        %v2941 = vpop.f32.mrf.mxu0
        %v2942 = vadd.f32 0.0, %v2941
        %v2943 = vpop.f32.mrf.mxu0
        %2944 = vmatprep.mubr.f32.mxu0 0.0
        %2945 = vmatmul.mubr.f32.gmra.mxu0 %v2780
        %v2946 = vpop.f32.mrf.mxu0
        %v2947 = vadd.f32 0.0, %v2946
        %v2948 = vpop.f32.mrf.mxu0
        %2949 = vmatprep.mubr.f32.mxu0 0.0
        %2950 = vmatmul.mubr.f32.gmra.mxu0 %v2781
        %v2951 = vpop.f32.mrf.mxu0
        %v2952 = vadd.f32 0.0, %v2951
        %v2953 = vpop.f32.mrf.mxu0
        %2954 = vmatprep.mubr.f32.mxu0 0.0
        %2955 = vmatmul.mubr.f32.gmra.mxu0 %v2782
        %v2956 = vpop.f32.mrf.mxu0
        %v2957 = vadd.f32 0.0, %v2956
        %v2958 = vpop.f32.mrf.mxu0
        %2959 = vmatprep.mubr.f32.mxu0 0.0
        %2960 = vmatmul.mubr.f32.gmra.mxu0 %v2783
        %v2961 = vpop.f32.mrf.mxu0
        %v2962 = vadd.f32 0.0, %v2961
        %v2963 = vpop.f32.mrf.mxu0
        %2964 = vmatprep.mubr.f32.mxu0 0.0
        %2965 = vmatmul.mubr.f32.gmra.mxu0 %v2784
        %v2966 = vpop.f32.mrf.mxu0
        %v2967 = vadd.f32 0.0, %v2966
        %v2968 = vpop.f32.mrf.mxu0
        %2969 = vmatprep.mubr.f32.mxu0 0.0
        %2970 = vmatmul.mubr.f32.gmra.mxu0 %v2785
        %v2971 = vpop.f32.mrf.mxu0
        %v2972 = vadd.f32 0.0, %v2971
        %v2973 = vpop.f32.mrf.mxu0
        %2974 = vmatprep.mubr.f32.mxu0 0.0
        %2975 = vmatmul.mubr.f32.gmra.mxu0 %v2786
        %v2976 = vpop.f32.mrf.mxu0
        %v2977 = vadd.f32 0.0, %v2976
        %v2978 = vpop.f32.mrf.mxu0
        %2979 = vmatprep.mubr.f32.mxu0 0.0
        %2980 = vmatmul.mubr.f32.gmra.mxu0 %v2787
        %v2981 = vpop.f32.mrf.mxu0
        %v2982 = vadd.f32 0.0, %v2981
        %v2983 = vpop.f32.mrf.mxu0
        %2984 = vmatprep.mubr.f32.mxu0 0.0
        %2985 = vmatmul.mubr.f32.gmra.mxu0 %v2788
        %v2986 = vpop.f32.mrf.mxu0
        %v2987 = vadd.f32 0.0, %v2986
        %v2988 = vpop.f32.mrf.mxu0
        %2989 = vmatprep.mubr.f32.mxu0 0.0
        %2990 = vmatmul.mubr.f32.gmra.mxu0 %v2789
        %v2991 = vpop.f32.mrf.mxu0
        %v2992 = vadd.f32 0.0, %v2991
        %v2993 = vpop.f32.mrf.mxu0
        %2994 = vmatprep.mubr.f32.mxu0 0.0
        %2995 = vmatmul.mubr.f32.gmra.mxu0 %v2790
        %v2996 = vpop.f32.mrf.mxu0
        %v2997 = vadd.f32 0.0, %v2996
        %v2998 = vpop.f32.mrf.mxu0
        %2999 = vmatprep.mubr.f32.mxu0 0.0
        %3000 = vmatmul.mubr.f32.gmra.mxu0 %v2791
        %v3001 = vpop.f32.mrf.mxu0
        %v3002 = vadd.f32 0.0, %v3001
        %v3003 = vpop.f32.mrf.mxu0
        %3004 = vmatprep.mubr.f32.mxu0 0.0
        %3005 = vmatmul.mubr.f32.gmra.mxu0 %v2792
        %v3006 = vpop.f32.mrf.mxu0
        %v3007 = vadd.f32 0.0, %v3006
        %v3008 = vpop.f32.mrf.mxu0
        %3009 = vmatprep.mubr.f32.mxu0 0.0
        %3010 = vmatmul.mubr.f32.gmra.mxu0 %v2793
        %v3011 = vpop.f32.mrf.mxu0
        %v3012 = vadd.f32 0.0, %v3011
        %v3013 = vpop.f32.mrf.mxu0
        %3014 = vmatprep.mubr.f32.mxu0 0.0
        %3015 = vmatmul.mubr.f32.gmra.mxu0 %v2794
        %v3016 = vpop.f32.mrf.mxu0
        %v3017 = vadd.f32 0.0, %v3016
        %v3018 = vpop.f32.mrf.mxu0
        %3019 = vmatprep.mubr.f32.mxu0 0.0
        %3020 = vmatmul.mubr.f32.gmra.mxu0 %v2795
        %v3021 = vpop.f32.mrf.mxu0
        %v3022 = vadd.f32 0.0, %v3021
        %v3023 = vpop.f32.mrf.mxu0
        %3024 = vmatprep.mubr.f32.mxu0 0.0
        %3025 = vmatmul.mubr.f32.gmra.mxu0 %v2796
        %v3026 = vpop.f32.mrf.mxu0
        %v3027 = vadd.f32 0.0, %v3026
        %v3028 = vpop.f32.mrf.mxu0
        %3029 = vmatprep.mubr.f32.mxu0 0.0
        %3030 = vmatmul.mubr.f32.gmra.mxu0 %v2797
        %v3031 = vpop.f32.mrf.mxu0
        %v3032 = vadd.f32 0.0, %v3031
        %v3033 = vpop.f32.mrf.mxu0
        %3034 = vmatprep.mubr.f32.mxu0 0.0
        %3035 = vmatmul.mubr.f32.gmra.mxu0 %v2798
        %v3036 = vpop.f32.mrf.mxu0
        %v3037 = vadd.f32 0.0, %v3036
        %v3038 = vpop.f32.mrf.mxu0
        %3039 = vdwg.mxu0
        %v3040 = vld [vmem:[%s8] sm:$0x1]
        %v3042 = vlaneseq
        %v3043 = vshrl.u32 %v3042, 7
        %v3044 = vsub.s32 0, %v3043
        %v3045 = vrot.slane %v3040, %v3044
        %v3047 = vmul.f32 %v2882, %v3045
        %v3048 = vmul.f32 %v2887, %v3045
        %v3049 = vmul.f32 %v2892, %v3045
        %v3050 = vmul.f32 %v2897, %v3045
        %v3051 = vmul.f32 %v2902, %v3045
        %v3052 = vmul.f32 %v2907, %v3045
        %v3053 = vmul.f32 %v2912, %v3045
        %v3054 = vmul.f32 %v2917, %v3045
        %v3055 = vmul.f32 %v2922, %v3045
        %v3056 = vmul.f32 %v2927, %v3045
        %v3057 = vmul.f32 %v2932, %v3045
        %v3058 = vmul.f32 %v2937, %v3045
        %v3059 = vmul.f32 %v2942, %v3045
        %v3060 = vmul.f32 %v2947, %v3045
        %v3061 = vmul.f32 %v2952, %v3045
        %v3062 = vmul.f32 %v2957, %v3045
        %v3063 = vmul.f32 %v2962, %v3045
        %v3064 = vmul.f32 %v2967, %v3045
        %v3065 = vmul.f32 %v2972, %v3045
        %v3066 = vmul.f32 %v2977, %v3045
        %v3067 = vmul.f32 %v2982, %v3045
        %v3068 = vmul.f32 %v2987, %v3045
        %v3069 = vmul.f32 %v2992, %v3045
        %v3070 = vmul.f32 %v2997, %v3045
        %v3071 = vmul.f32 %v3002, %v3045
        %v3072 = vmul.f32 %v3007, %v3045
        %v3073 = vmul.f32 %v3012, %v3045
        %v3074 = vmul.f32 %v3017, %v3045
        %v3075 = vmul.f32 %v3022, %v3045
        %v3076 = vmul.f32 %v3027, %v3045
        %v3077 = vmul.f32 %v3032, %v3045
        %v3078 = vmul.f32 %v3037, %v3045
        %v3079 = vld [vmem:[%s9] sm:$0x1]
        %v3081 = vlaneseq
        %v3082 = vshrl.u32 %v3081, 7
        %v3083 = vsub.s32 0, %v3082
        %v3084 = vrot.slane %v3079, %v3083
        %v3086 = vadd.f32 %v3047, %v3084
        %v3087 = vadd.f32 %v3048, %v3084
        %v3088 = vadd.f32 %v3049, %v3084
        %v3089 = vadd.f32 %v3050, %v3084
        %v3090 = vadd.f32 %v3051, %v3084
        %v3091 = vadd.f32 %v3052, %v3084
        %v3092 = vadd.f32 %v3053, %v3084
        %v3093 = vadd.f32 %v3054, %v3084
        %v3094 = vadd.f32 %v3055, %v3084
        %v3095 = vadd.f32 %v3056, %v3084
        %v3096 = vadd.f32 %v3057, %v3084
        %v3097 = vadd.f32 %v3058, %v3084
        %v3098 = vadd.f32 %v3059, %v3084
        %v3099 = vadd.f32 %v3060, %v3084
        %v3100 = vadd.f32 %v3061, %v3084
        %v3101 = vadd.f32 %v3062, %v3084
        %v3102 = vadd.f32 %v3063, %v3084
        %v3103 = vadd.f32 %v3064, %v3084
        %v3104 = vadd.f32 %v3065, %v3084
        %v3105 = vadd.f32 %v3066, %v3084
        %v3106 = vadd.f32 %v3067, %v3084
        %v3107 = vadd.f32 %v3068, %v3084
        %v3108 = vadd.f32 %v3069, %v3084
        %v3109 = vadd.f32 %v3070, %v3084
        %v3110 = vadd.f32 %v3071, %v3084
        %v3111 = vadd.f32 %v3072, %v3084
        %v3112 = vadd.f32 %v3073, %v3084
        %v3113 = vadd.f32 %v3074, %v3084
        %v3114 = vadd.f32 %v3075, %v3084
        %v3115 = vadd.f32 %v3076, %v3084
        %v3116 = vadd.f32 %v3077, %v3084
        %v3117 = vadd.f32 %v3078, %v3084
        %v3118 = vadd.f32 %v3086, %v422
        %v3119 = vadd.f32 %v3087, %v423
        %v3120 = vadd.f32 %v3088, %v424
        %v3121 = vadd.f32 %v3089, %v425
        %v3122 = vadd.f32 %v3090, %v426
        %v3123 = vadd.f32 %v3091, %v427
        %v3124 = vadd.f32 %v3092, %v428
        %v3125 = vadd.f32 %v3093, %v429
        %v3126 = vadd.f32 %v3094, %v430
        %v3127 = vadd.f32 %v3095, %v431
        %v3128 = vadd.f32 %v3096, %v432
        %v3129 = vadd.f32 %v3097, %v433
        %v3130 = vadd.f32 %v3098, %v434
        %v3131 = vadd.f32 %v3099, %v435
        %v3132 = vadd.f32 %v3100, %v436
        %v3133 = vadd.f32 %v3101, %v437
        %v3134 = vadd.f32 %v3102, %v438
        %v3135 = vadd.f32 %v3103, %v439
        %v3136 = vadd.f32 %v3104, %v440
        %v3137 = vadd.f32 %v3105, %v441
        %v3138 = vadd.f32 %v3106, %v442
        %v3139 = vadd.f32 %v3107, %v443
        %v3140 = vadd.f32 %v3108, %v444
        %v3141 = vadd.f32 %v3109, %v445
        %v3142 = vadd.f32 %v3110, %v446
        %v3143 = vadd.f32 %v3111, %v447
        %v3144 = vadd.f32 %v3112, %v448
        %v3145 = vadd.f32 %v3113, %v449
        %v3146 = vadd.f32 %v3114, %v450
        %v3147 = vadd.f32 %v3115, %v451
        %v3148 = vadd.f32 %v3116, %v452
        %v3149 = vadd.f32 %v3117, %v453
        %3150 = vst [vmem:[%s421] sm:$0xff] %v3118
        %3151 = vst [vmem:[%s421 + $0x8] sm:$0xff] %v3119
        %3152 = vst [vmem:[%s421 + $0x10] sm:$0xff] %v3120
        %3153 = vst [vmem:[%s421 + $0x18] sm:$0xff] %v3121
        %3154 = vst [vmem:[%s421 + $0x20] sm:$0xff] %v3122
        %3155 = vst [vmem:[%s421 + $0x28] sm:$0xff] %v3123
        %3156 = vst [vmem:[%s421 + $0x30] sm:$0xff] %v3124
        %3157 = vst [vmem:[%s421 + $0x38] sm:$0xff] %v3125
        %3158 = vst [vmem:[%s421 + $0x40] sm:$0xff] %v3126
        %3159 = vst [vmem:[%s421 + $0x48] sm:$0xff] %v3127
        %3160 = vst [vmem:[%s421 + $0x50] sm:$0xff] %v3128
        %3161 = vst [vmem:[%s421 + $0x58] sm:$0xff] %v3129
        %3162 = vst [vmem:[%s421 + $0x60] sm:$0xff] %v3130
        %3163 = vst [vmem:[%s421 + $0x68] sm:$0xff] %v3131
        %3164 = vst [vmem:[%s421 + $0x70] sm:$0xff] %v3132
        %3165 = vst [vmem:[%s421 + $0x78] sm:$0xff] %v3133
        %3166 = vst [vmem:[%s421 + $0x80] sm:$0xff] %v3134
        %3167 = vst [vmem:[%s421 + $0x88] sm:$0xff] %v3135
        %3168 = vst [vmem:[%s421 + $0x90] sm:$0xff] %v3136
        %3169 = vst [vmem:[%s421 + $0x98] sm:$0xff] %v3137
        %3170 = vst [vmem:[%s421 + $0xa0] sm:$0xff] %v3138
        %3171 = vst [vmem:[%s421 + $0xa8] sm:$0xff] %v3139
        %3172 = vst [vmem:[%s421 + $0xb0] sm:$0xff] %v3140
        %3173 = vst [vmem:[%s421 + $0xb8] sm:$0xff] %v3141
        %3174 = vst [vmem:[%s421 + $0xc0] sm:$0xff] %v3142
        %3175 = vst [vmem:[%s421 + $0xc8] sm:$0xff] %v3143
        %3176 = vst [vmem:[%s421 + $0xd0] sm:$0xff] %v3144
        %3177 = vst [vmem:[%s421 + $0xd8] sm:$0xff] %v3145
        %3178 = vst [vmem:[%s421 + $0xe0] sm:$0xff] %v3146
        %3179 = vst [vmem:[%s421 + $0xe8] sm:$0xff] %v3147
        %3180 = vst [vmem:[%s421 + $0xf0] sm:$0xff] %v3148
        %3181 = vst [vmem:[%s421 + $0xf8] sm:$0xff] %v3149
        %s3182 = sand.u32 %s252, 1
        %s3183 = scalar_lea.sflag [#allocation5], %s3182
        %s3184 = sand.u32 %s252, 1
        %s3185 = smul.addr %s3184, 256
        %s3186 = scalar_lea.vmem [#allocation11], %s3185
        // Predicated region
        $region77: #{tpu_custom_call.1} parent=59 // pred_check
          %p3187 = pneg %p262
        $region78: #{tpu_custom_call.1} parent=59 // pred_check_branch
          %3189 = sbr.rel (%p3187) target = $region80
        $region79: #{tpu_custom_call.1} parent=59 // pred_region
          %s3191 = ssub.s32 4096, 4096
          %3192 = vsyncadd %s3183, %s3191
          %s3193 = smul.addr %s29, 32
          %s3194 = smul.addr %s3193, 128
          %s3195 = scalar_lea.hbm %s10, %s3194
          %s3196 = sshll.u32 %s3186, 4
          %s3197 = int_to_ptr.vmem [resolvable:$true] %s3196
          %3202 = dma.vmem_to_hbm [thread:$0]  %s3197, 4096, %s3195, %s3183, 128, 128, 8
        $region80: #{tpu_custom_call.1} parent=59 // pred_fallthru
          _
      $region60: #{tpu_custom_call.1} parent=5 // pred_fallthru
        _
      %p3203 = scmp.le.s32.totalorder 2, %s24
      // Predicated region
      $region81: #{tpu_custom_call.1} parent=5 // pred_check
        %p3204 = pneg %p3203
      $region82: #{tpu_custom_call.1} parent=5 // pred_check_branch
        %3206 = sbr.rel (%p3204) target = $region84
      $region83: #{tpu_custom_call.1} parent=5 // pred_region
        %s3207 = ssub.s32 %s24, 2
        // Predicated region
        $region85: #{tpu_custom_call.1} parent=83 // pred_check
          %p3208 = pneg %p268
        $region86: #{tpu_custom_call.1} parent=83 // pred_check_branch
          %3210 = sbr.rel (%p3208) target = $region88
        $region87: #{tpu_custom_call.1} parent=83 // pred_region
          %s3211 = sand.u32 %s253, 1
          %s3212 = scalar_lea.sflag [#allocation5], %s3211
          %s3213 = sand.u32 %s253, 1
          %s3214 = smul.addr %s3213, 256
          %s3215 = scalar_lea.vmem [#allocation11], %s3214
          %3216 = dma.done %s3212, 4096
        $region88: #{tpu_custom_call.1} parent=83 // pred_fallthru
          _
      $region84: #{tpu_custom_call.1} parent=5 // pred_fallthru
        _
    $region6: #{tpu_custom_call.1} parent=1 // loop_footer
      %s28 = sadd.s32 1, %s24
    $region7: #{tpu_custom_call.1} parent=1 // loop_footer_branch
      %23 = sbr.rel target = $region3
    $region8: #{tpu_custom_call.1} parent=1 // loop_exit
      _
    %3217 = vsyncpa [#allocation4], 1
    %s3218 = scalar_lea.sflag [#allocation4], 1
    %3219 = vsyncpa %s3218, 1
    %3220 = vsyncpa [#allocation7], 1
    %3221 = vsyncpa [#allocation10], 1
    %3222 = vsyncpa [#allocation5], 1
    %s3223 = scalar_lea.sflag [#allocation5], 1
    %3224 = vsyncpa %s3223, 1

</llo_original>
